<compile_context>
chip_gen: v7x
topology: tpu7x:2x2x1
jax: 0.10.0
libtpu: 0.0.40
codegen_flags: <defaults>
</compile_context>

<pallas_src>
import jax
import jax.numpy as jnp
from jax.experimental import pallas as pl
from jax.experimental.pallas import tpu as pltpu

D_MODEL = 32
DFF = 64
NUM_HEADS = 4
HEAD_DIM = D_MODEL // NUM_HEADS
EPS = 1e-5


def _layer_norm(x, gamma, beta):
    mu = jnp.mean(x, axis=-1, keepdims=True)
    var = jnp.mean((x - mu) ** 2, axis=-1, keepdims=True)
    return (x - mu) * jax.lax.rsqrt(var + EPS) * gamma + beta


def encoder_layer_kernel(
    x_ref,      # (S, D)      this batch element's activations
    kb_ref,     # (1, S)      additive key-padding bias (0 / -1e9)
    ln_ref,     # (4, D)      rows: g1, be1, g2, be2
    wqkv_ref,   # (D, 3D)
    bpk_ref,    # (4, 3D)     rows: bqkv | bo(+pad) | bf1(+pad) | bf2(+pad)
    wo_ref,     # (D, D)
    w1_ref,     # (D, DFF)
    w2_ref,     # (DFF, D)
    out_ref,    # (S, D)
):
    x = x_ref[...]
    kb = kb_ref[...]                       # (1, S)

    ln = ln_ref[...]
    g1, be1 = ln[0:1, :], ln[1:2, :]
    g2, be2 = ln[2:3, :], ln[3:4, :]

    bpk = bpk_ref[...]
    bqkv = bpk[0:1, :]                     # (1, 3D)
    bo = bpk[1:2, 0:D_MODEL]               # (1, D)
    bf1 = bpk[2:3, 0:DFF]                  # (1, DFF)
    bf2 = bpk[3:4, 0:D_MODEL]              # (1, D)

    # --- sublayer 1: pre-LN multi-head self-attention + residual ---
    xn = _layer_norm(x, g1, be1)
    qkv = jnp.dot(xn, wqkv_ref[...], preferred_element_type=jnp.float32) + bqkv   # (S, 3D)

    hd = HEAD_DIM
    # head-split via static lane slices stacked on a new leading (head) axis
    q = jnp.stack([qkv[:, h * hd:(h + 1) * hd] for h in range(NUM_HEADS)], axis=0)                       # (H,S,hd)
    k = jnp.stack([qkv[:, D_MODEL + h * hd:D_MODEL + (h + 1) * hd] for h in range(NUM_HEADS)], axis=0)   # (H,S,hd)
    v = jnp.stack([qkv[:, 2 * D_MODEL + h * hd:2 * D_MODEL + (h + 1) * hd] for h in range(NUM_HEADS)], axis=0)

    scale = 1.0 / (hd ** 0.5)
    # all-head scores in one batched dot_general
    s = jnp.einsum('hqe,hke->hqk', q, k, preferred_element_type=jnp.float32) * scale   # (H,S,S)
    s = s + kb[None, :, :]                 # padded keys -> -1e9 (broadcast over heads & queries)
    s = s - jnp.max(s, axis=-1, keepdims=True)
    p = jnp.exp(s)
    inv = pl.reciprocal(jnp.sum(p, axis=-1, keepdims=True), approx=True)
    p = p * inv
    # all-head contexts in one batched dot_general
    ctx = jnp.einsum('hqk,hke->hqe', p, v, preferred_element_type=jnp.float32)          # (H,S,hd)

    # lane-concat heads (XLU, idle slot) then a single K=D output projection
    ctx_cat = jnp.concatenate([ctx[h] for h in range(NUM_HEADS)], axis=-1)              # (S, D)
    attn = jnp.dot(ctx_cat, wo_ref[...], preferred_element_type=jnp.float32) + bo

    # dropout1: identity (eval mode)
    x = x + attn

    # --- sublayer 2: pre-LN position-wise feed-forward + residual ---
    xn2 = _layer_norm(x, g2, be2)
    h1 = jnp.dot(xn2, w1_ref[...], preferred_element_type=jnp.float32) + bf1
    h1 = jnp.maximum(h1, 0.0)              # ReLU
    # dropout inside FFN + dropout2: identity (eval mode)
    ff = jnp.dot(h1, w2_ref[...], preferred_element_type=jnp.float32) + bf2
    out_ref[...] = (x + ff).astype(out_ref.dtype)


def encoder_layer(x, mask, params):
    B, S, D = x.shape

    # ---- pack parameters (fewer operands -> fewer DMA descriptors) ----
    wqkv = jnp.concatenate([params["wq"], params["wk"], params["wv"]], axis=1)   # (D, 3D)
    ln = jnp.concatenate([params["g1"], params["be1"],
                          params["g2"], params["be2"]], axis=0)                   # (4, D)
    bqkv = jnp.concatenate([params["bq"], params["bk"], params["bv"]], axis=1)    # (1, 3D)
    bpk = jnp.zeros((4, 3 * D), jnp.float32)
    bpk = bpk.at[0, :].set(bqkv[0])
    bpk = bpk.at[1, :D].set(params["bo"][0])
    bpk = bpk.at[2, :DFF].set(params["bf1"][0])
    bpk = bpk.at[3, :D].set(params["bf2"][0])

    # tiny additive key-padding bias: O(B*S), replaces the old (B*S, B*S) operand
    kbias = jnp.where(mask.reshape(B, 1, S) > 0.5, 0.0, -1e9).astype(jnp.float32)

    args = (x, kbias, ln, wqkv, bpk, params["wo"], params["w1"], params["w2"])

    out = pl.pallas_call(
        encoder_layer_kernel,
        out_shape=jax.ShapeDtypeStruct((B, S, D), x.dtype),
        grid=(B,),                                   # one batch element per step
        in_specs=[
            pl.BlockSpec((None, S, D), lambda b: (b, 0, 0)),   # x        (batch-sliced)
            pl.BlockSpec((None, 1, S), lambda b: (b, 0, 0)),   # key bias (batch-sliced)
            pl.BlockSpec((4, D), lambda b: (0, 0)),            # ln pack
            pl.BlockSpec((D, 3 * D), lambda b: (0, 0)),        # wqkv
            pl.BlockSpec((4, 3 * D), lambda b: (0, 0)),        # bias pack
            pl.BlockSpec((D, D), lambda b: (0, 0)),            # wo
            pl.BlockSpec((D, DFF), lambda b: (0, 0)),          # w1
            pl.BlockSpec((DFF, D), lambda b: (0, 0)),          # w2
        ],
        out_specs=pl.BlockSpec((None, S, D), lambda b: (b, 0, 0)),
        compiler_params=pltpu.CompilerParams(
            dimension_semantics=("parallel",)),                # megacore / v7x 2-TC sharding
    )(*args)
    return out


def init_params(key, d_model=D_MODEL, dff=DFF):
    ks = jax.random.split(key, 6)

    def lin(k, fin, fout):
        return jax.random.normal(k, (fin, fout), jnp.float32) * 0.02

    return {
        "g1": jnp.ones((1, d_model), jnp.float32),
        "be1": jnp.zeros((1, d_model), jnp.float32),
        "wq": lin(ks[0], d_model, d_model), "bq": jnp.zeros((1, d_model), jnp.float32),
        "wk": lin(ks[1], d_model, d_model), "bk": jnp.zeros((1, d_model), jnp.float32),
        "wv": lin(ks[2], d_model, d_model), "bv": jnp.zeros((1, d_model), jnp.float32),
        "wo": lin(ks[3], d_model, d_model), "bo": jnp.zeros((1, d_model), jnp.float32),
        "g2": jnp.ones((1, d_model), jnp.float32),
        "be2": jnp.zeros((1, d_model), jnp.float32),
        "w1": lin(ks[4], d_model, dff), "bf1": jnp.zeros((1, dff), jnp.float32),
        "w2": lin(ks[5], dff, d_model), "bf2": jnp.zeros((1, d_model), jnp.float32),
    }


def reference(x, mask, p):
    # Pure-JAX mirror of the PyTorch forward (eval mode) for correctness check.
    def ln(t, g, b):
        mu = t.mean(-1, keepdims=True)
        var = ((t - mu) ** 2).mean(-1, keepdims=True)
        return (t - mu) / jnp.sqrt(var + EPS) * g + b

    B, S, D = x.shape
    xn = ln(x, p["g1"], p["be1"])
    q = xn @ p["wq"] + p["bq"]
    k = xn @ p["wk"] + p["bk"]
    v = xn @ p["wv"] + p["bv"]
    qh = q.reshape(B, S, NUM_HEADS, HEAD_DIM).transpose(0, 2, 1, 3)
    kh = k.reshape(B, S, NUM_HEADS, HEAD_DIM).transpose(0, 2, 1, 3)
    vh = v.reshape(B, S, NUM_HEADS, HEAD_DIM).transpose(0, 2, 1, 3)
    scores = jnp.einsum("bhqd,bhkd->bhqk", qh, kh) / (HEAD_DIM ** 0.5)
    scores = jnp.where(mask > 0.5, scores, -1e9)
    attn = jax.nn.softmax(scores, axis=-1)
    ctx = jnp.einsum("bhqk,bhkd->bhqd", attn, vh).transpose(0, 2, 1, 3).reshape(B, S, D)
    x = x + (ctx @ p["wo"] + p["bo"])
    xn2 = ln(x, p["g2"], p["be2"])
    h = jax.nn.relu(xn2 @ p["w1"] + p["bf1"])
    return x + (h @ p["w2"] + p["bf2"])


if __name__ == "__main__":
    key = jax.random.PRNGKey(0)
    kx, kp = jax.random.split(key)
    B, S = 2, 8
    x = jax.random.normal(kx, (B, S, D_MODEL), jnp.float32)
    # padding mask: batch 1 has its last two tokens padded
    mask = jnp.ones((B, 1, 1, S), jnp.float32).at[1, :, :, 6:].set(0.0)

    params = init_params(kp)
    out = encoder_layer(x, mask, params)
    out = jax.block_until_ready(out)

    ref = reference(x, mask, params)
    assert out.shape == (B, S, D_MODEL)
    assert jnp.all(jnp.isfinite(out))
    # tolerance accounts for the EUP approximate reciprocal in the softmax
    assert jnp.allclose(out, ref, atol=1e-3, rtol=1e-3), float(jnp.max(jnp.abs(out - ref)))
    print("KERNEL_OK")
</pallas_src>

<mosaic_0001>
module attributes {stable_mosaic.version = 11 : i64} {
  func.func @encoder_layer_kernel(%arg0: i32, %arg1: memref<1x8x32xf32, #tpu.memory_space<vmem>>, %arg2: memref<1x1x8xf32, #tpu.memory_space<vmem>>, %arg3: memref<4x32xf32, #tpu.memory_space<vmem>>, %arg4: memref<32x96xf32, #tpu.memory_space<vmem>>, %arg5: memref<4x96xf32, #tpu.memory_space<vmem>>, %arg6: memref<32x32xf32, #tpu.memory_space<vmem>>, %arg7: memref<32x64xf32, #tpu.memory_space<vmem>>, %arg8: memref<64x32xf32, #tpu.memory_space<vmem>>, %arg9: memref<1x8x32xf32, #tpu.memory_space<vmem>>) attributes {dimension_semantics = [#tpu.dimension_semantics<parallel>], iteration_bounds = array<i64: 2>, scalar_prefetch = 0 : i64, scratch_operands = 0 : i64, tpu.core_type = #tpu.core_type<tc>, window_params = [{transform_indices = @transform_0, window_bounds = array<i64: 1, 8, 32>}, {transform_indices = @transform_1, window_bounds = array<i64: 1, 1, 8>}, {pipeline_mode = #tpu.pipeline_mode<synchronous>, transform_indices = @transform_2, window_bounds = array<i64: 4, 32>}, {pipeline_mode = #tpu.pipeline_mode<synchronous>, transform_indices = @transform_3, window_bounds = array<i64: 32, 96>}, {pipeline_mode = #tpu.pipeline_mode<synchronous>, transform_indices = @transform_4, window_bounds = array<i64: 4, 96>}, {pipeline_mode = #tpu.pipeline_mode<synchronous>, transform_indices = @transform_5, window_bounds = array<i64: 32, 32>}, {pipeline_mode = #tpu.pipeline_mode<synchronous>, transform_indices = @transform_6, window_bounds = array<i64: 32, 64>}, {pipeline_mode = #tpu.pipeline_mode<synchronous>, transform_indices = @transform_7, window_bounds = array<i64: 64, 32>}, {transform_indices = @transform_8, window_bounds = array<i64: 1, 8, 32>}]} {
    %c0 = arith.constant 0 : index
    %c0_0 = arith.constant 0 : index
    %c0_1 = arith.constant 0 : index
    %0 = vector.load %arg1[%c0, %c0_0, %c0_1] : memref<1x8x32xf32, #tpu.memory_space<vmem>>, vector<1x8x32xf32>
    %1 = vector.shape_cast %0 : vector<1x8x32xf32> to vector<8x32xf32>
    %c0_2 = arith.constant 0 : index
    %c0_3 = arith.constant 0 : index
    %c0_4 = arith.constant 0 : index
    %2 = vector.load %arg2[%c0_2, %c0_3, %c0_4] : memref<1x1x8xf32, #tpu.memory_space<vmem>>, vector<1x1x8xf32>
    %3 = vector.shape_cast %2 : vector<1x1x8xf32> to vector<1x8xf32>
    %c0_5 = arith.constant 0 : index
    %c0_6 = arith.constant 0 : index
    %4 = vector.load %arg3[%c0_5, %c0_6] : memref<4x32xf32, #tpu.memory_space<vmem>>, vector<4x32xf32>
    %5 = vector.extract_strided_slice %4 {offsets = [0, 0], sizes = [1, 32], strides = [1, 1]} : vector<4x32xf32> to vector<1x32xf32>
    %6 = vector.extract_strided_slice %4 {offsets = [1, 0], sizes = [1, 32], strides = [1, 1]} : vector<4x32xf32> to vector<1x32xf32>
    %7 = vector.extract_strided_slice %4 {offsets = [2, 0], sizes = [1, 32], strides = [1, 1]} : vector<4x32xf32> to vector<1x32xf32>
    %8 = vector.extract_strided_slice %4 {offsets = [3, 0], sizes = [1, 32], strides = [1, 1]} : vector<4x32xf32> to vector<1x32xf32>
    %c0_7 = arith.constant 0 : index
    %c0_8 = arith.constant 0 : index
    %9 = vector.load %arg5[%c0_7, %c0_8] : memref<4x96xf32, #tpu.memory_space<vmem>>, vector<4x96xf32>
    %10 = vector.extract_strided_slice %9 {offsets = [0, 0], sizes = [1, 96], strides = [1, 1]} : vector<4x96xf32> to vector<1x96xf32>
    %11 = vector.extract_strided_slice %9 {offsets = [1, 0], sizes = [1, 32], strides = [1, 1]} : vector<4x96xf32> to vector<1x32xf32>
    %12 = vector.extract_strided_slice %9 {offsets = [2, 0], sizes = [1, 64], strides = [1, 1]} : vector<4x96xf32> to vector<1x64xf32>
    %13 = vector.extract_strided_slice %9 {offsets = [3, 0], sizes = [1, 32], strides = [1, 1]} : vector<4x96xf32> to vector<1x32xf32>
    %cst = arith.constant dense<0.000000e+00> : vector<8xf32>
    %14 = vector.multi_reduction <add>, %1, %cst [1] : vector<8x32xf32> to vector<8xf32>
    %15 = vector.shape_cast %14 : vector<8xf32> to vector<8x1xf32>
    %cst_9 = arith.constant 3.200000e+01 : f32
    %16 = vector.broadcast %cst_9 : f32 to vector<8x1xf32>
    %17 = arith.divf %15, %16 : vector<8x1xf32>
    %18 = vector.broadcast %17 : vector<8x1xf32> to vector<8x32xf32>
    %19 = arith.subf %1, %18 : vector<8x32xf32>
    %20 = arith.mulf %19, %19 : vector<8x32xf32>
    %cst_10 = arith.constant dense<0.000000e+00> : vector<8xf32>
    %21 = vector.multi_reduction <add>, %20, %cst_10 [1] : vector<8x32xf32> to vector<8xf32>
    %22 = vector.shape_cast %21 : vector<8xf32> to vector<8x1xf32>
    %cst_11 = arith.constant 3.200000e+01 : f32
    %23 = vector.broadcast %cst_11 : f32 to vector<8x1xf32>
    %24 = arith.divf %22, %23 : vector<8x1xf32>
    %25 = vector.broadcast %17 : vector<8x1xf32> to vector<8x32xf32>
    %26 = arith.subf %1, %25 : vector<8x32xf32>
    %cst_12 = arith.constant 9.99999974E-6 : f32
    %27 = vector.broadcast %cst_12 : f32 to vector<8x1xf32>
    %28 = arith.addf %24, %27 : vector<8x1xf32>
    %29 = math.rsqrt %28 : vector<8x1xf32>
    %30 = vector.broadcast %29 : vector<8x1xf32> to vector<8x32xf32>
    %31 = arith.mulf %26, %30 : vector<8x32xf32>
    %32 = vector.broadcast %5 : vector<1x32xf32> to vector<8x32xf32>
    %33 = arith.mulf %31, %32 : vector<8x32xf32>
    %34 = vector.broadcast %6 : vector<1x32xf32> to vector<8x32xf32>
    %35 = arith.addf %33, %34 : vector<8x32xf32>
    %c0_13 = arith.constant 0 : index
    %c0_14 = arith.constant 0 : index
    %36 = vector.load %arg4[%c0_13, %c0_14] : memref<32x96xf32, #tpu.memory_space<vmem>>, vector<32x96xf32>
    %cst_15 = arith.constant dense<0.000000e+00> : vector<8x96xf32>
    %37 = tpu.matmul %35, %36, %cst_15 {dimension_numbers = #tpu.dot_dimension_numbers<[1], [0], [0], [1], [0, 0, 1, 1], [], []>} : vector<8x32xf32>, vector<32x96xf32>, vector<8x96xf32> -> vector<8x96xf32>
    %38 = vector.broadcast %10 : vector<1x96xf32> to vector<8x96xf32>
    %39 = arith.addf %37, %38 : vector<8x96xf32>
    %40 = vector.extract_strided_slice %39 {offsets = [0, 0], sizes = [8, 8], strides = [1, 1]} : vector<8x96xf32> to vector<8x8xf32>
    %41 = vector.extract_strided_slice %39 {offsets = [0, 8], sizes = [8, 8], strides = [1, 1]} : vector<8x96xf32> to vector<8x8xf32>
    %42 = vector.extract_strided_slice %39 {offsets = [0, 16], sizes = [8, 8], strides = [1, 1]} : vector<8x96xf32> to vector<8x8xf32>
    %43 = vector.extract_strided_slice %39 {offsets = [0, 24], sizes = [8, 8], strides = [1, 1]} : vector<8x96xf32> to vector<8x8xf32>
    %44 = vector.shape_cast %40 : vector<8x8xf32> to vector<1x8x8xf32>
    %45 = vector.shape_cast %41 : vector<8x8xf32> to vector<1x8x8xf32>
    %46 = vector.shape_cast %42 : vector<8x8xf32> to vector<1x8x8xf32>
    %47 = vector.shape_cast %43 : vector<8x8xf32> to vector<1x8x8xf32>
    %48 = tpu.concatenate %44, %45, %46, %47 in 0 : vector<1x8x8xf32>, vector<1x8x8xf32>, vector<1x8x8xf32>, vector<1x8x8xf32> -> vector<4x8x8xf32>
    %49 = vector.extract_strided_slice %39 {offsets = [0, 32], sizes = [8, 8], strides = [1, 1]} : vector<8x96xf32> to vector<8x8xf32>
    %50 = vector.extract_strided_slice %39 {offsets = [0, 40], sizes = [8, 8], strides = [1, 1]} : vector<8x96xf32> to vector<8x8xf32>
    %51 = vector.extract_strided_slice %39 {offsets = [0, 48], sizes = [8, 8], strides = [1, 1]} : vector<8x96xf32> to vector<8x8xf32>
    %52 = vector.extract_strided_slice %39 {offsets = [0, 56], sizes = [8, 8], strides = [1, 1]} : vector<8x96xf32> to vector<8x8xf32>
    %53 = vector.shape_cast %49 : vector<8x8xf32> to vector<1x8x8xf32>
    %54 = vector.shape_cast %50 : vector<8x8xf32> to vector<1x8x8xf32>
    %55 = vector.shape_cast %51 : vector<8x8xf32> to vector<1x8x8xf32>
    %56 = vector.shape_cast %52 : vector<8x8xf32> to vector<1x8x8xf32>
    %57 = tpu.concatenate %53, %54, %55, %56 in 0 : vector<1x8x8xf32>, vector<1x8x8xf32>, vector<1x8x8xf32>, vector<1x8x8xf32> -> vector<4x8x8xf32>
    %58 = vector.extract_strided_slice %39 {offsets = [0, 64], sizes = [8, 8], strides = [1, 1]} : vector<8x96xf32> to vector<8x8xf32>
    %59 = vector.extract_strided_slice %39 {offsets = [0, 72], sizes = [8, 8], strides = [1, 1]} : vector<8x96xf32> to vector<8x8xf32>
    %60 = vector.extract_strided_slice %39 {offsets = [0, 80], sizes = [8, 8], strides = [1, 1]} : vector<8x96xf32> to vector<8x8xf32>
    %61 = vector.extract_strided_slice %39 {offsets = [0, 88], sizes = [8, 8], strides = [1, 1]} : vector<8x96xf32> to vector<8x8xf32>
    %62 = vector.shape_cast %58 : vector<8x8xf32> to vector<1x8x8xf32>
    %63 = vector.shape_cast %59 : vector<8x8xf32> to vector<1x8x8xf32>
    %64 = vector.shape_cast %60 : vector<8x8xf32> to vector<1x8x8xf32>
    %65 = vector.shape_cast %61 : vector<8x8xf32> to vector<1x8x8xf32>
    %66 = tpu.concatenate %62, %63, %64, %65 in 0 : vector<1x8x8xf32>, vector<1x8x8xf32>, vector<1x8x8xf32>, vector<1x8x8xf32> -> vector<4x8x8xf32>
    "tpu.trace_start"() <{level = 10 : i32, message = "hqe,hke->hqk"}> : () -> ()
    %cst_16 = arith.constant dense<0.000000e+00> : vector<4x8x8xf32>
    %67 = tpu.matmul %48, %57, %cst_16 {dimension_numbers = #tpu.dot_dimension_numbers<[2], [2], [1], [1], [0, 0, 0, 1, 1, 1], [0], [0]>} : vector<4x8x8xf32>, vector<4x8x8xf32>, vector<4x8x8xf32> -> vector<4x8x8xf32>
    "tpu.trace_stop"() : () -> ()
    %cst_17 = arith.constant 0.353553385 : f32
    %68 = vector.broadcast %cst_17 : f32 to vector<4x8x8xf32>
    %69 = arith.mulf %67, %68 : vector<4x8x8xf32>
    %70 = vector.shape_cast %3 : vector<1x8xf32> to vector<1x1x8xf32>
    %71 = vector.broadcast %70 : vector<1x1x8xf32> to vector<4x8x8xf32>
    %72 = arith.addf %69, %71 : vector<4x8x8xf32>
    %cst_18 = arith.constant dense<0xFF800000> : vector<4x8xf32>
    %73 = vector.multi_reduction <maximumf>, %72, %cst_18 [2] : vector<4x8x8xf32> to vector<4x8xf32>
    %74 = vector.shape_cast %73 : vector<4x8xf32> to vector<4x8x1xf32>
    %75 = vector.broadcast %74 : vector<4x8x1xf32> to vector<4x8x8xf32>
    %76 = arith.subf %72, %75 : vector<4x8x8xf32>
    %77 = math.exp %76 : vector<4x8x8xf32>
    %cst_19 = arith.constant dense<0.000000e+00> : vector<4x8xf32>
    %78 = vector.multi_reduction <add>, %77, %cst_19 [2] : vector<4x8x8xf32> to vector<4x8xf32>
    %79 = vector.shape_cast %78 : vector<4x8xf32> to vector<4x8x1xf32>
    %80 = tpu.reciprocal %79 {approx = true} : vector<4x8x1xf32> -> vector<4x8x1xf32>
    %81 = vector.broadcast %80 : vector<4x8x1xf32> to vector<4x8x8xf32>
    %82 = arith.mulf %77, %81 : vector<4x8x8xf32>
    "tpu.trace_start"() <{level = 10 : i32, message = "hqk,hke->hqe"}> : () -> ()
    %cst_20 = arith.constant dense<0.000000e+00> : vector<4x8x8xf32>
    %83 = tpu.matmul %82, %66, %cst_20 {dimension_numbers = #tpu.dot_dimension_numbers<[2], [1], [1], [2], [0, 0, 0, 1, 1, 2], [0], [0]>} : vector<4x8x8xf32>, vector<4x8x8xf32>, vector<4x8x8xf32> -> vector<4x8x8xf32>
    "tpu.trace_stop"() : () -> ()
    %84 = vector.extract_strided_slice %83 {offsets = [0, 0, 0], sizes = [1, 8, 8], strides = [1, 1, 1]} : vector<4x8x8xf32> to vector<1x8x8xf32>
    %85 = vector.shape_cast %84 : vector<1x8x8xf32> to vector<8x8xf32>
    %86 = vector.extract_strided_slice %83 {offsets = [1, 0, 0], sizes = [1, 8, 8], strides = [1, 1, 1]} : vector<4x8x8xf32> to vector<1x8x8xf32>
    %87 = vector.shape_cast %86 : vector<1x8x8xf32> to vector<8x8xf32>
    %88 = vector.extract_strided_slice %83 {offsets = [2, 0, 0], sizes = [1, 8, 8], strides = [1, 1, 1]} : vector<4x8x8xf32> to vector<1x8x8xf32>
    %89 = vector.shape_cast %88 : vector<1x8x8xf32> to vector<8x8xf32>
    %90 = vector.extract_strided_slice %83 {offsets = [3, 0, 0], sizes = [1, 8, 8], strides = [1, 1, 1]} : vector<4x8x8xf32> to vector<1x8x8xf32>
    %91 = vector.shape_cast %90 : vector<1x8x8xf32> to vector<8x8xf32>
    %92 = tpu.concatenate %85, %87, %89, %91 in 1 : vector<8x8xf32>, vector<8x8xf32>, vector<8x8xf32>, vector<8x8xf32> -> vector<8x32xf32>
    %c0_21 = arith.constant 0 : index
    %c0_22 = arith.constant 0 : index
    %93 = vector.load %arg6[%c0_21, %c0_22] : memref<32x32xf32, #tpu.memory_space<vmem>>, vector<32x32xf32>
    %cst_23 = arith.constant dense<0.000000e+00> : vector<8x32xf32>
    %94 = tpu.matmul %92, %93, %cst_23 {dimension_numbers = #tpu.dot_dimension_numbers<[1], [0], [0], [1], [0, 0, 1, 1], [], []>} : vector<8x32xf32>, vector<32x32xf32>, vector<8x32xf32> -> vector<8x32xf32>
    %95 = vector.broadcast %11 : vector<1x32xf32> to vector<8x32xf32>
    %96 = arith.addf %94, %95 : vector<8x32xf32>
    %97 = arith.addf %1, %96 : vector<8x32xf32>
    %cst_24 = arith.constant dense<0.000000e+00> : vector<8xf32>
    %98 = vector.multi_reduction <add>, %97, %cst_24 [1] : vector<8x32xf32> to vector<8xf32>
    %99 = vector.shape_cast %98 : vector<8xf32> to vector<8x1xf32>
    %cst_25 = arith.constant 3.200000e+01 : f32
    %100 = vector.broadcast %cst_25 : f32 to vector<8x1xf32>
    %101 = arith.divf %99, %100 : vector<8x1xf32>
    %102 = vector.broadcast %101 : vector<8x1xf32> to vector<8x32xf32>
    %103 = arith.subf %97, %102 : vector<8x32xf32>
    %104 = arith.mulf %103, %103 : vector<8x32xf32>
    %cst_26 = arith.constant dense<0.000000e+00> : vector<8xf32>
    %105 = vector.multi_reduction <add>, %104, %cst_26 [1] : vector<8x32xf32> to vector<8xf32>
    %106 = vector.shape_cast %105 : vector<8xf32> to vector<8x1xf32>
    %cst_27 = arith.constant 3.200000e+01 : f32
    %107 = vector.broadcast %cst_27 : f32 to vector<8x1xf32>
    %108 = arith.divf %106, %107 : vector<8x1xf32>
    %109 = vector.broadcast %101 : vector<8x1xf32> to vector<8x32xf32>
    %110 = arith.subf %97, %109 : vector<8x32xf32>
    %cst_28 = arith.constant 9.99999974E-6 : f32
    %111 = vector.broadcast %cst_28 : f32 to vector<8x1xf32>
    %112 = arith.addf %108, %111 : vector<8x1xf32>
    %113 = math.rsqrt %112 : vector<8x1xf32>
    %114 = vector.broadcast %113 : vector<8x1xf32> to vector<8x32xf32>
    %115 = arith.mulf %110, %114 : vector<8x32xf32>
    %116 = vector.broadcast %7 : vector<1x32xf32> to vector<8x32xf32>
    %117 = arith.mulf %115, %116 : vector<8x32xf32>
    %118 = vector.broadcast %8 : vector<1x32xf32> to vector<8x32xf32>
    %119 = arith.addf %117, %118 : vector<8x32xf32>
    %c0_29 = arith.constant 0 : index
    %c0_30 = arith.constant 0 : index
    %120 = vector.load %arg7[%c0_29, %c0_30] : memref<32x64xf32, #tpu.memory_space<vmem>>, vector<32x64xf32>
    %cst_31 = arith.constant dense<0.000000e+00> : vector<8x64xf32>
    %121 = tpu.matmul %119, %120, %cst_31 {dimension_numbers = #tpu.dot_dimension_numbers<[1], [0], [0], [1], [0, 0, 1, 1], [], []>} : vector<8x32xf32>, vector<32x64xf32>, vector<8x64xf32> -> vector<8x64xf32>
    %122 = vector.broadcast %12 : vector<1x64xf32> to vector<8x64xf32>
    %123 = arith.addf %121, %122 : vector<8x64xf32>
    %cst_32 = arith.constant 0.000000e+00 : f32
    %124 = vector.broadcast %cst_32 : f32 to vector<8x64xf32>
    %125 = arith.maximumf %123, %124 : vector<8x64xf32>
    %c0_33 = arith.constant 0 : index
    %c0_34 = arith.constant 0 : index
    %126 = vector.load %arg8[%c0_33, %c0_34] : memref<64x32xf32, #tpu.memory_space<vmem>>, vector<64x32xf32>
    %cst_35 = arith.constant dense<0.000000e+00> : vector<8x32xf32>
    %127 = tpu.matmul %125, %126, %cst_35 {dimension_numbers = #tpu.dot_dimension_numbers<[1], [0], [0], [1], [0, 0, 1, 1], [], []>} : vector<8x64xf32>, vector<64x32xf32>, vector<8x32xf32> -> vector<8x32xf32>
    %128 = vector.broadcast %13 : vector<1x32xf32> to vector<8x32xf32>
    %129 = arith.addf %127, %128 : vector<8x32xf32>
    %130 = arith.addf %97, %129 : vector<8x32xf32>
    %c0_36 = arith.constant 0 : index
    %c0_37 = arith.constant 0 : index
    %c0_38 = arith.constant 0 : index
    %131 = vector.load %arg9[%c0_36, %c0_37, %c0_38] : memref<1x8x32xf32, #tpu.memory_space<vmem>>, vector<1x8x32xf32>
    %132 = vector.shape_cast %131 : vector<1x8x32xf32> to vector<8x32xf32>
    %133 = vector.shape_cast %130 : vector<8x32xf32> to vector<1x8x32xf32>
    tpu.vector_store %arg9[%c0_36, %c0_37, %c0_38], %133 {strides = array<i32>} : memref<1x8x32xf32, #tpu.memory_space<vmem>>, vector<1x8x32xf32>,
    return
  }
  func.func @transform_0(%arg0: i32) -> (i32, i32, i32) {
    %c0_i32 = arith.constant 0 : i32
    %c0_i32_0 = arith.constant 0 : i32
    %c0_i32_1 = arith.constant 0 : i32
    return %arg0, %c0_i32, %c0_i32_0 : i32, i32, i32
  }
  func.func @transform_1(%arg0: i32) -> (i32, i32, i32) {
    %c0_i32 = arith.constant 0 : i32
    %c0_i32_0 = arith.constant 0 : i32
    %c0_i32_1 = arith.constant 0 : i32
    return %arg0, %c0_i32, %c0_i32_0 : i32, i32, i32
  }
  func.func @transform_2(%arg0: i32) -> (i32, i32) {
    %c0_i32 = arith.constant 0 : i32
    %c0_i32_0 = arith.constant 0 : i32
    %c0_i32_1 = arith.constant 0 : i32
    return %c0_i32, %c0_i32_0 : i32, i32
  }
  func.func @transform_3(%arg0: i32) -> (i32, i32) {
    %c0_i32 = arith.constant 0 : i32
    %c0_i32_0 = arith.constant 0 : i32
    %c0_i32_1 = arith.constant 0 : i32
    return %c0_i32, %c0_i32_0 : i32, i32
  }
  func.func @transform_4(%arg0: i32) -> (i32, i32) {
    %c0_i32 = arith.constant 0 : i32
    %c0_i32_0 = arith.constant 0 : i32
    %c0_i32_1 = arith.constant 0 : i32
    return %c0_i32, %c0_i32_0 : i32, i32
  }
  func.func @transform_5(%arg0: i32) -> (i32, i32) {
    %c0_i32 = arith.constant 0 : i32
    %c0_i32_0 = arith.constant 0 : i32
    %c0_i32_1 = arith.constant 0 : i32
    return %c0_i32, %c0_i32_0 : i32, i32
  }
  func.func @transform_6(%arg0: i32) -> (i32, i32) {
    %c0_i32 = arith.constant 0 : i32
    %c0_i32_0 = arith.constant 0 : i32
    %c0_i32_1 = arith.constant 0 : i32
    return %c0_i32, %c0_i32_0 : i32, i32
  }
  func.func @transform_7(%arg0: i32) -> (i32, i32) {
    %c0_i32 = arith.constant 0 : i32
    %c0_i32_0 = arith.constant 0 : i32
    %c0_i32_1 = arith.constant 0 : i32
    return %c0_i32, %c0_i32_0 : i32, i32
  }
  func.func @transform_8(%arg0: i32) -> (i32, i32, i32) {
    %c0_i32 = arith.constant 0 : i32
    %c0_i32_0 = arith.constant 0 : i32
    %c0_i32_1 = arith.constant 0 : i32
    return %arg0, %c0_i32, %c0_i32_0 : i32, i32, i32
  }
}

</mosaic_0001>

<llo_original>
// kernel: tpu_custom_call.1
$region0: #{tpu_custom_call.1}
  #allocation0 [shape = 'u32[]', space=smem, size = 0x4, offset = 0x4, fixed_abs, tag = 'smem constant byte address 0x4 - core index']
  #allocation1 [shape = 'u32[144,128]{1,0:T(1,128)}', space=vmem, size = 0x12000, scoped, tag = 'internal scratch']
  %s0 = inlined_call_operand.hbm [shape: f32[2,8,32], index: 0, kind: input, shape index: {}]
  %s1 = inlined_call_operand.vmem [shape: f32[2,1,8], index: 1, kind: input, shape index: {}]
  %s2 = inlined_call_operand.vmem [shape: f32[4,32], index: 2, kind: input, shape index: {}]
  %s3 = inlined_call_operand.vmem [shape: f32[32,96], index: 3, kind: input, shape index: {}]
  %s4 = inlined_call_operand.vmem [shape: f32[4,96], index: 4, kind: input, shape index: {}]
  %s5 = inlined_call_operand.vmem [shape: f32[32,32], index: 5, kind: input, shape index: {}]
  %s6 = inlined_call_operand.vmem [shape: f32[32,64], index: 6, kind: input, shape index: {}]
  %s7 = inlined_call_operand.vmem [shape: f32[64,32], index: 7, kind: input, shape index: {}]
  %s8 = inlined_call_operand.hbm [shape: f32[2,8,32], index: 8, kind: output, shape index: {}]
  %s9 = sld [smem:[#allocation0]]
  $region69: #{tpu_custom_call.1} parent=0
    _
  %s11 = ssub.s32 1, %s9
  %s12 = scalar_select 0, %s11, %s9
  $region1: #{tpu_custom_call.1} parent=0
    #allocation2 [shape = 'u8[8192]{0}', space=vmem, size = 0x2000, scoped, tag = 'input window, operand 0']
    #allocation3 [shape = 's32[2]{0}', space=sflag, size = 0x8, scoped, tag = 'scoped memory for tpu_custom_call.1']
    #allocation4 [shape = 's32[2]{0}', space=sflag, size = 0x8, scoped, tag = 'scoped memory for tpu_custom_call.1']
    #allocation5 [shape = 'u8[8192]{0}', space=vmem, size = 0x2000, scoped, tag = 'output window, operand 0']
    %13 = vsyncpa [#allocation3], 0
    %s14 = scalar_lea.sflag [#allocation3], 1
    %15 = vsyncpa %s14, 0
    %16 = vsyncpa [#allocation4], 0
    %s17 = scalar_lea.sflag [#allocation4], 1
    %18 = vsyncpa %s17, 0
    loop: start=0, step=1, limit=4
    $region2: #{tpu_custom_call.1} parent=1 // loop_pre_header
      _
    $region3: #{tpu_custom_call.1} parent=1 // loop_header
      %s20 = sphi 0, %s24
      %p21 = scmp.ge.s32.totalorder %s20, 4
      %s30 = sphi 0, %s32
      %s33 = sphi 0, %s30
      %s34 = sphi 0, %s33
      %s50 = sphi 0, %s34
      %s56 = sphi 0, %s58
      %s59 = sphi 0, %s56
      %s60 = sphi 0, %s59
      %s76 = sphi 0, %s60
      %s80 = sphi 0, %s80
      %s82 = sphi 0, %s80
      %s83 = sphi 0, %s82
      %s97 = sphi 0, %s83
      %s101 = sphi 0, %s101
      %s103 = sphi 0, %s101
      %s104 = sphi 0, %s103
      %s118 = sphi 0, %s104
      %s122 = sphi 0, %s122
      %s124 = sphi 0, %s122
      %s125 = sphi 0, %s124
      %s139 = sphi 0, %s125
      %s143 = sphi 0, %s143
      %s145 = sphi 0, %s143
      %s146 = sphi 0, %s145
      %s160 = sphi 0, %s146
      %s164 = sphi 0, %s164
      %s166 = sphi 0, %s164
      %s167 = sphi 0, %s166
      %s181 = sphi 0, %s167
      %s185 = sphi 0, %s185
      %s187 = sphi 0, %s185
      %s188 = sphi 0, %s187
      %s202 = sphi 0, %s188
      %s208 = sphi 0, %s210
      %s211 = sphi 0, %s208
      %s212 = sphi 0, %s211
      %s228 = sphi 0, %s212
    $region4: #{tpu_custom_call.1} parent=1 // loop_header_branch
      %23 = sbr.rel (%p21) target = $region8
    $region5: #{tpu_custom_call.1} parent=1 // loop_body
      %s25 = ssub.s32 %s20, 1
      %s26 = ssub.s32 %s20, 2
      %s27 = sadd.s32 %s20, 1
      %s28 = ssub.s32 %s20, %s27
      %p29 = scmp.eq.s32.totalorder %s28, 0
      %s31 = sadd.s32 %s30, 1
      %s32 = scalar_select %p29, %s30, %s31
      %p35 = pneg %p29
      %p36 = scmp.eq.s32.totalorder %s20, 1
      %p37 = por %p35, %p36
      %p38 = scmp.ne.s32.totalorder %s30, %s33
      %p39 = scmp.eq.s32.totalorder %s20, 0
      %p40 = por %p38, %p39
      %p41 = scmp.ne.s32.totalorder %s30, %s33
      %p42 = scmp.eq.s32.totalorder %s25, 1
      %p43 = por %p41, %p42
      %p44 = scmp.ne.s32.totalorder %s33, %s34
      %p45 = scmp.eq.s32.totalorder %s25, 0
      %p46 = por %p44, %p45
      %p47 = scmp.ne.s32.totalorder %s33, %s34
      %p48 = scmp.eq.s32.totalorder %s26, 1
      %p49 = por %p47, %p48
      %p51 = scmp.ne.s32.totalorder %s34, %s50
      %p52 = scmp.eq.s32.totalorder %s26, 0
      %p53 = por %p51, %p52
      %s54 = ssub.s32 %s20, %s27
      %p55 = scmp.eq.s32.totalorder %s54, 0
      %s57 = sadd.s32 %s56, 1
      %s58 = scalar_select %p55, %s56, %s57
      %p61 = pneg %p55
      %p62 = scmp.eq.s32.totalorder %s20, 1
      %p63 = por %p61, %p62
      %p64 = scmp.ne.s32.totalorder %s56, %s59
      %p65 = scmp.eq.s32.totalorder %s20, 0
      %p66 = por %p64, %p65
      %p67 = scmp.ne.s32.totalorder %s56, %s59
      %p68 = scmp.eq.s32.totalorder %s25, 1
      %p69 = por %p67, %p68
      %p70 = scmp.ne.s32.totalorder %s59, %s60
      %p71 = scmp.eq.s32.totalorder %s25, 0
      %p72 = por %p70, %p71
      %p73 = scmp.ne.s32.totalorder %s59, %s60
      %p74 = scmp.eq.s32.totalorder %s26, 1
      %p75 = por %p73, %p74
      %p77 = scmp.ne.s32.totalorder %s60, %s76
      %p78 = scmp.eq.s32.totalorder %s26, 0
      %p79 = por %p77, %p78
      %s81 = sadd.s32 %s80, 1
      %p84 = scmp.eq.s32.totalorder %s20, 1
      %p85 = scmp.ne.s32.totalorder %s80, %s82
      %p86 = scmp.eq.s32.totalorder %s20, 0
      %p87 = por %p85, %p86
      %p88 = scmp.ne.s32.totalorder %s80, %s82
      %p89 = scmp.eq.s32.totalorder %s25, 1
      %p90 = por %p88, %p89
      %p91 = scmp.ne.s32.totalorder %s82, %s83
      %p92 = scmp.eq.s32.totalorder %s25, 0
      %p93 = por %p91, %p92
      %p94 = scmp.ne.s32.totalorder %s82, %s83
      %p95 = scmp.eq.s32.totalorder %s26, 1
      %p96 = por %p94, %p95
      %p98 = scmp.ne.s32.totalorder %s83, %s97
      %p99 = scmp.eq.s32.totalorder %s26, 0
      %p100 = por %p98, %p99
      %s102 = sadd.s32 %s101, 1
      %p105 = scmp.eq.s32.totalorder %s20, 1
      %p106 = scmp.ne.s32.totalorder %s101, %s103
      %p107 = scmp.eq.s32.totalorder %s20, 0
      %p108 = por %p106, %p107
      %p109 = scmp.ne.s32.totalorder %s101, %s103
      %p110 = scmp.eq.s32.totalorder %s25, 1
      %p111 = por %p109, %p110
      %p112 = scmp.ne.s32.totalorder %s103, %s104
      %p113 = scmp.eq.s32.totalorder %s25, 0
      %p114 = por %p112, %p113
      %p115 = scmp.ne.s32.totalorder %s103, %s104
      %p116 = scmp.eq.s32.totalorder %s26, 1
      %p117 = por %p115, %p116
      %p119 = scmp.ne.s32.totalorder %s104, %s118
      %p120 = scmp.eq.s32.totalorder %s26, 0
      %p121 = por %p119, %p120
      %s123 = sadd.s32 %s122, 1
      %p126 = scmp.eq.s32.totalorder %s20, 1
      %p127 = scmp.ne.s32.totalorder %s122, %s124
      %p128 = scmp.eq.s32.totalorder %s20, 0
      %p129 = por %p127, %p128
      %p130 = scmp.ne.s32.totalorder %s122, %s124
      %p131 = scmp.eq.s32.totalorder %s25, 1
      %p132 = por %p130, %p131
      %p133 = scmp.ne.s32.totalorder %s124, %s125
      %p134 = scmp.eq.s32.totalorder %s25, 0
      %p135 = por %p133, %p134
      %p136 = scmp.ne.s32.totalorder %s124, %s125
      %p137 = scmp.eq.s32.totalorder %s26, 1
      %p138 = por %p136, %p137
      %p140 = scmp.ne.s32.totalorder %s125, %s139
      %p141 = scmp.eq.s32.totalorder %s26, 0
      %p142 = por %p140, %p141
      %s144 = sadd.s32 %s143, 1
      %p147 = scmp.eq.s32.totalorder %s20, 1
      %p148 = scmp.ne.s32.totalorder %s143, %s145
      %p149 = scmp.eq.s32.totalorder %s20, 0
      %p150 = por %p148, %p149
      %p151 = scmp.ne.s32.totalorder %s143, %s145
      %p152 = scmp.eq.s32.totalorder %s25, 1
      %p153 = por %p151, %p152
      %p154 = scmp.ne.s32.totalorder %s145, %s146
      %p155 = scmp.eq.s32.totalorder %s25, 0
      %p156 = por %p154, %p155
      %p157 = scmp.ne.s32.totalorder %s145, %s146
      %p158 = scmp.eq.s32.totalorder %s26, 1
      %p159 = por %p157, %p158
      %p161 = scmp.ne.s32.totalorder %s146, %s160
      %p162 = scmp.eq.s32.totalorder %s26, 0
      %p163 = por %p161, %p162
      %s165 = sadd.s32 %s164, 1
      %p168 = scmp.eq.s32.totalorder %s20, 1
      %p169 = scmp.ne.s32.totalorder %s164, %s166
      %p170 = scmp.eq.s32.totalorder %s20, 0
      %p171 = por %p169, %p170
      %p172 = scmp.ne.s32.totalorder %s164, %s166
      %p173 = scmp.eq.s32.totalorder %s25, 1
      %p174 = por %p172, %p173
      %p175 = scmp.ne.s32.totalorder %s166, %s167
      %p176 = scmp.eq.s32.totalorder %s25, 0
      %p177 = por %p175, %p176
      %p178 = scmp.ne.s32.totalorder %s166, %s167
      %p179 = scmp.eq.s32.totalorder %s26, 1
      %p180 = por %p178, %p179
      %p182 = scmp.ne.s32.totalorder %s167, %s181
      %p183 = scmp.eq.s32.totalorder %s26, 0
      %p184 = por %p182, %p183
      %s186 = sadd.s32 %s185, 1
      %p189 = scmp.eq.s32.totalorder %s20, 1
      %p190 = scmp.ne.s32.totalorder %s185, %s187
      %p191 = scmp.eq.s32.totalorder %s20, 0
      %p192 = por %p190, %p191
      %p193 = scmp.ne.s32.totalorder %s185, %s187
      %p194 = scmp.eq.s32.totalorder %s25, 1
      %p195 = por %p193, %p194
      %p196 = scmp.ne.s32.totalorder %s187, %s188
      %p197 = scmp.eq.s32.totalorder %s25, 0
      %p198 = por %p196, %p197
      %p199 = scmp.ne.s32.totalorder %s187, %s188
      %p200 = scmp.eq.s32.totalorder %s26, 1
      %p201 = por %p199, %p200
      %p203 = scmp.ne.s32.totalorder %s188, %s202
      %p204 = scmp.eq.s32.totalorder %s26, 0
      %p205 = por %p203, %p204
      %s206 = ssub.s32 %s20, %s27
      %p207 = scmp.eq.s32.totalorder %s206, 0
      %s209 = sadd.s32 %s208, 1
      %s210 = scalar_select %p207, %s208, %s209
      %p213 = pneg %p207
      %p214 = scmp.eq.s32.totalorder %s20, 1
      %p215 = por %p213, %p214
      %p216 = scmp.ne.s32.totalorder %s208, %s211
      %p217 = scmp.eq.s32.totalorder %s20, 0
      %p218 = por %p216, %p217
      %p219 = scmp.ne.s32.totalorder %s208, %s211
      %p220 = scmp.eq.s32.totalorder %s25, 1
      %p221 = por %p219, %p220
      %p222 = scmp.ne.s32.totalorder %s211, %s212
      %p223 = scmp.eq.s32.totalorder %s25, 0
      %p224 = por %p222, %p223
      %p225 = scmp.ne.s32.totalorder %s211, %s212
      %p226 = scmp.eq.s32.totalorder %s26, 1
      %p227 = por %p225, %p226
      %p229 = scmp.ne.s32.totalorder %s212, %s228
      %p230 = scmp.eq.s32.totalorder %s26, 0
      %p231 = por %p229, %p230
      %p232 = scmp.le.s32.totalorder 1, %s20
      %p233 = scmp.lt.s32.totalorder %s20, 3
      %p234 = pnand %p232, %p233
      %p235 = pneg %p234
      // Predicated region
      $region9: #{tpu_custom_call.1} parent=5 // pred_check
        _
      $region10: #{tpu_custom_call.1} parent=5 // pred_check_branch
        %237 = sbr.rel (%p234) target = $region12
      $region11: #{tpu_custom_call.1} parent=5 // pred_region
        %s238 = ssub.s32 %s20, 1
        // Predicated region
        $region13: #{tpu_custom_call.1} parent=11 // pred_check
          %p239 = pneg %p93
        $region14: #{tpu_custom_call.1} parent=11 // pred_check_branch
          %241 = sbr.rel (%p239) target = $region16
        $region15: #{tpu_custom_call.1} parent=11 // pred_region
          _
        $region16: #{tpu_custom_call.1} parent=11 // pred_fallthru
          _
        // Predicated region
        $region17: #{tpu_custom_call.1} parent=11 // pred_check
          %p242 = pneg %p114
        $region18: #{tpu_custom_call.1} parent=11 // pred_check_branch
          %244 = sbr.rel (%p242) target = $region20
        $region19: #{tpu_custom_call.1} parent=11 // pred_region
          _
        $region20: #{tpu_custom_call.1} parent=11 // pred_fallthru
          _
        // Predicated region
        $region21: #{tpu_custom_call.1} parent=11 // pred_check
          %p245 = pneg %p135
        $region22: #{tpu_custom_call.1} parent=11 // pred_check_branch
          %247 = sbr.rel (%p245) target = $region24
        $region23: #{tpu_custom_call.1} parent=11 // pred_region
          _
        $region24: #{tpu_custom_call.1} parent=11 // pred_fallthru
          _
        // Predicated region
        $region25: #{tpu_custom_call.1} parent=11 // pred_check
          %p248 = pneg %p156
        $region26: #{tpu_custom_call.1} parent=11 // pred_check_branch
          %250 = sbr.rel (%p248) target = $region28
        $region27: #{tpu_custom_call.1} parent=11 // pred_region
          _
        $region28: #{tpu_custom_call.1} parent=11 // pred_fallthru
          _
        // Predicated region
        $region29: #{tpu_custom_call.1} parent=11 // pred_check
          %p251 = pneg %p177
        $region30: #{tpu_custom_call.1} parent=11 // pred_check_branch
          %253 = sbr.rel (%p251) target = $region32
        $region31: #{tpu_custom_call.1} parent=11 // pred_region
          _
        $region32: #{tpu_custom_call.1} parent=11 // pred_fallthru
          _
        // Predicated region
        $region33: #{tpu_custom_call.1} parent=11 // pred_check
          %p254 = pneg %p198
        $region34: #{tpu_custom_call.1} parent=11 // pred_check_branch
          %256 = sbr.rel (%p254) target = $region36
        $region35: #{tpu_custom_call.1} parent=11 // pred_region
          _
        $region36: #{tpu_custom_call.1} parent=11 // pred_fallthru
          _
      $region12: #{tpu_custom_call.1} parent=5 // pred_fallthru
        _
      %p257 = scmp.lt.s32.totalorder %s20, 2
      // Predicated region
      $region37: #{tpu_custom_call.1} parent=5 // pred_check
        %p258 = pneg %p257
      $region38: #{tpu_custom_call.1} parent=5 // pred_check_branch
        %260 = sbr.rel (%p258) target = $region40
      $region39: #{tpu_custom_call.1} parent=5 // pred_region
        // Predicated region
        $region41: #{tpu_custom_call.1} parent=39 // pred_check
          %p261 = pneg %p40
        $region42: #{tpu_custom_call.1} parent=39 // pred_check_branch
          %263 = sbr.rel (%p261) target = $region44
        $region43: #{tpu_custom_call.1} parent=39 // pred_region
          %s264 = sand.u32 %s30, 1
          %s265 = scalar_lea.sflag [#allocation3], %s264
          %s266 = sand.u32 %s30, 1
          %s267 = smul.addr %s266, 8
          %s268 = scalar_lea.vmem [#allocation2], %s267
          %s270 = ssub.s32 128, 128
          %271 = vsyncadd %s265, %s270
          %s272 = smul.addr %s20, 128
          %s273 = scalar_lea.hbm %s0, %s272
          %s275 = sshll.u32 %s268, 4
          %s276 = int_to_ptr.vmem [resolvable:$true] %s275
          %278 = dma.hbm_to_vmem [thread:$0]  %s273, 128, %s276, %s265
        $region44: #{tpu_custom_call.1} parent=39 // pred_fallthru
          _
        // Predicated region
        $region45: #{tpu_custom_call.1} parent=39 // pred_check
          %p279 = pneg %p66
        $region46: #{tpu_custom_call.1} parent=39 // pred_check_branch
          %281 = sbr.rel (%p279) target = $region48
        $region47: #{tpu_custom_call.1} parent=39 // pred_region
          %p282 = scmp.lt.s32.totalorder %s20, 1
          %s283 = scalar_select %p282, %s20, 1
          %s284 = scalar_lea.vmem %s1, %s283
        $region48: #{tpu_custom_call.1} parent=39 // pred_fallthru
          _
      $region40: #{tpu_custom_call.1} parent=5 // pred_fallthru
        _
      %p285 = scmp.le.s32.totalorder 1, %s20
      %p286 = scmp.lt.s32.totalorder %s20, 3
      %p287 = pnand %p285, %p286
      %p288 = pneg %p287
      // Predicated region
      $region49: #{tpu_custom_call.1} parent=5 // pred_check
        _
      $region50: #{tpu_custom_call.1} parent=5 // pred_check_branch
        %290 = sbr.rel (%p287) target = $region52
      $region51: #{tpu_custom_call.1} parent=5 // pred_region
        %s291 = ssub.s32 %s20, 1
        %s292 = sand.u32 %s33, 1
        %s293 = scalar_lea.sflag [#allocation3], %s292
        %s294 = sand.u32 %s33, 1
        %s295 = smul.addr %s294, 8
        %s296 = scalar_lea.vmem [#allocation2], %s295
        // Predicated region
        $region53: #{tpu_custom_call.1} parent=51 // pred_check
          %p297 = pneg %p46
        $region54: #{tpu_custom_call.1} parent=51 // pred_check_branch
          %299 = sbr.rel (%p297) target = $region56
        $region55: #{tpu_custom_call.1} parent=51 // pred_region
          %300 = dma.done %s293, 128
        $region56: #{tpu_custom_call.1} parent=51 // pred_fallthru
          _
        %s301 = sand.u32 %s33, 1
        %s302 = scalar_lea.sflag [#allocation3], %s301
        %s303 = sand.u32 %s33, 1
        %s304 = smul.addr %s303, 8
        %s305 = scalar_lea.vmem [#allocation2], %s304
        %p306 = pneg %p46
        %p307 = pneg %p43
        %p308 = scmp.lt.s32.totalorder %s25, 1
        %s309 = scalar_select %p308, %s25, 1
        %s310 = scalar_lea.vmem %s1, %s309
        %p311 = pneg %p72
        %p312 = pneg %p69
        %p313 = pneg %p93
        %p314 = pneg %p90
        %p315 = pneg %p114
        %p316 = pneg %p111
        %p317 = pneg %p135
        %p318 = pneg %p132
        %p319 = pneg %p156
        %p320 = pneg %p153
        %p321 = pneg %p177
        %p322 = pneg %p174
        %p323 = pneg %p198
        %p324 = pneg %p195
        %p325 = pneg %p224
        %p326 = pneg %p221
        %s327 = sand.u32 %s211, 1
        %s328 = scalar_lea.sflag [#allocation4], %s327
        %s329 = sand.u32 %s211, 1
        %s330 = smul.addr %s329, 8
        %s331 = scalar_lea.vmem [#allocation5], %s330
        %p332 = scmp.lt.s32.totalorder %s25, 1
        %s333 = scalar_select %p332, %s25, 1
        %s334 = scalar_lea.vmem %s1, %s333
        %v335 = vld [vmem:[%s296] sm:$0xff]
        %v336 = vld [vmem:[%s334] sm:$0x1]
        %v337 = vld [vmem:[%s2] sm:$0xf]
        %v338 = vld [vmem:[%s4] sm:$0xf]
        %vm339 = vcmask 261120
        %v340 = vsel %vm339, %v335, 0.0
        %341 = vadd.xlane.f32.xlu0 %v340
        %v342 = vpop.xlane.xlu0 %341
        %v343 = vrcp.pop 32.0
        %v344 = vmul.f32 %v342, %v343
        %v345 = vsub.f32 %v335, %v344
        %v346 = vmul.f32 %v345, %v345
        %v347 = vsel %vm339, %v346, 0.0
        %348 = vadd.xlane.f32.xlu0 %v347
        %v349 = vpop.xlane.xlu0 %348
        %v350 = vmul.f32 %v349, %v343
        %v351 = vadd.f32 %v350, 1e-05
        %v352 = vrsqrt.pop %v351
        %v353 = vmul.f32 %v345, %v352
        %v354 = vlaneseq
        %v355 = vshrl.u32 %v354, 7
        %v356 = vsub.s32 0, %v355
        %v357 = vrot.slane %v337, %v356
        %v358 = vmul.f32 %v353, %v357
        %v359 = vlaneseq
        %v360 = vshrl.u32 %v359, 7
        %v361 = vsub.s32 1, %v360
        %v362 = vrot.slane %v337, %v361
        %v363 = vadd.f32 %v358, %v362
        %v364 = vld [vmem:[%s3] sm:$0xff]
        %v365 = vld [vmem:[%s3 + $0x8] sm:$0xff]
        %v366 = vld [vmem:[%s3 + $0x10] sm:$0xff]
        %v367 = vld [vmem:[%s3 + $0x18] sm:$0xff]
        %v368 = vlaneseq
        %v369 = vshrl.u32 %v368, 7
        %v370 = vsub.s32 0, %v369
        %v371 = vrot.slane %v338, %v370
        %v373 = vsel %vm339, %v363, 0
        %375 = vmatprep.subr.mxu0 0.0
        %376 = vmatpush1.msra.mxu0 %v364
        %377 = vmatprep.subr.mxu0 0.0
        %378 = vmatpush1.msra.mxu0 %v365
        %379 = vmatprep.subr.mxu0 0.0
        %380 = vmatpush1.msra.mxu0 %v366
        %381 = vmatprep.subr.mxu0 0.0
        %382 = vmatpush1.msra.mxu0 %v367
        %383 = vmatprep.subr.mxu0 0.0
        %384 = vmatpush1.msra.mxu0 0.0
        %385 = vmatprep.subr.mxu0 0.0
        %386 = vmatpush1.msra.mxu0 0.0
        %387 = vmatprep.subr.mxu0 0.0
        %388 = vmatpush1.msra.mxu0 0.0
        %389 = vmatprep.subr.mxu0 0.0
        %390 = vmatpush1.msra.mxu0 0.0
        %391 = vmatprep.subr.mxu0 0.0
        %392 = vmatpush1.msra.mxu0 0.0
        %393 = vmatprep.subr.mxu0 0.0
        %394 = vmatpush1.msra.mxu0 0.0
        %395 = vmatprep.subr.mxu0 0.0
        %396 = vmatpush1.msra.mxu0 0.0
        %397 = vmatprep.subr.mxu0 0.0
        %398 = vmatpush1.msra.mxu0 0.0
        %399 = vmatprep.subr.mxu0 0.0
        %400 = vmatpush1.msra.mxu0 0.0
        %401 = vmatprep.subr.mxu0 0.0
        %402 = vmatpush1.msra.mxu0 0.0
        %403 = vmatprep.subr.mxu0 0.0
        %404 = vmatpush1.msra.mxu0 0.0
        %405 = vmatprep.subr.mxu0 0.0
        %406 = vmatpush1.msra.mxu0 0.0
        %407 = vmatprep.subr.mxu0 0.0
        %408 = vmatpush1.msra.mxu0 0.0
        %409 = vmatprep.subr.mxu0 0.0
        %410 = vmatpush1.msra.mxu0 0.0
        %411 = vmatprep.subr.mxu0 0.0
        %412 = vmatpush1.msra.mxu0 0.0
        %413 = vmatprep.subr.mxu0 0.0
        %414 = vmatpush1.msra.mxu0 0.0
        %415 = vmatprep.subr.mxu0 0.0
        %416 = vmatpush1.msra.mxu0 0.0
        %417 = vmatprep.subr.mxu0 0.0
        %418 = vmatpush1.msra.mxu0 0.0
        %419 = vmatprep.subr.mxu0 0.0
        %420 = vmatpush1.msra.mxu0 0.0
        %421 = vmatprep.subr.mxu0 0.0
        %422 = vmatpush1.msra.mxu0 0.0
        %423 = vmatprep.subr.mxu0 0.0
        %424 = vmatpush1.msra.mxu0 0.0
        %425 = vmatprep.subr.mxu0 0.0
        %426 = vmatpush1.msra.mxu0 0.0
        %427 = vmatprep.subr.mxu0 0.0
        %428 = vmatpush1.msra.mxu0 0.0
        %429 = vmatprep.subr.mxu0 0.0
        %430 = vmatpush1.msra.mxu0 0.0
        %431 = vmatprep.subr.mxu0 0.0
        %432 = vmatpush1.msra.mxu0 0.0
        %433 = vmatprep.subr.mxu0 0.0
        %434 = vmatpush1.msra.mxu0 0.0
        %435 = vmatprep.subr.mxu0 0.0
        %436 = vmatpush1.msra.mxu0 0.0
        %437 = vmatprep.subr.mxu0 0.0
        %438 = vmatpush1.msra.mxu0 0.0
        %439 = vmatprep.mubr.f32.mxu0 0.0
        %440 = vmatmul.mubr.f32.gmra.mrb[0].mxu0 %v373
        %v441 = vpop.f32.mrb[0].mxu0
        %v442 = vadd.f32 %v371, %v441
        %v443 = vpop.f32.mrb[0].mxu0
        %444 = vdwg.mxu0
        %446 = vrot.lane.b32.xlu0 %v442, 120
        %v447 = vpop.permute.xlu0 %446
        %448 = vrot.lane.b32.xlu0 %v442, 112
        %v449 = vpop.permute.xlu0 %448
        %450 = vrot.lane.b32.xlu0 %v442, 104
        %v451 = vpop.permute.xlu0 %450
        %452 = vrot.lane.b32.xlu0 %v442, 96
        %v453 = vpop.permute.xlu0 %452
        %vm454 = vcmask 64512
        %v455 = vsel %vm454, %v442, 0
        %v457 = vsel %vm454, %v453, 0
        %459 = vmatprep.subr.mxu0 0.0
        %460 = vmatpush1.xpose.msra.mxu0 %v457
        %461 = vmatprep.subr.mxu0 0.0
        %462 = vmatpush1.xpose.msra.mxu0 0.0
        %463 = vmatprep.subr.mxu0 0.0
        %464 = vmatpush1.xpose.msra.mxu0 0.0
        %465 = vmatprep.subr.mxu0 0.0
        %466 = vmatpush1.xpose.msra.mxu0 0.0
        %467 = vmatprep.subr.mxu0 0.0
        %468 = vmatpush1.xpose.msra.mxu0 0.0
        %469 = vmatprep.subr.mxu0 0.0
        %470 = vmatpush1.xpose.msra.mxu0 0.0
        %471 = vmatprep.subr.mxu0 0.0
        %472 = vmatpush1.xpose.msra.mxu0 0.0
        %473 = vmatprep.subr.mxu0 0.0
        %474 = vmatpush1.xpose.msra.mxu0 0.0
        %475 = vmatprep.subr.mxu0 0.0
        %476 = vmatpush1.xpose.msra.mxu0 0.0
        %477 = vmatprep.subr.mxu0 0.0
        %478 = vmatpush1.xpose.msra.mxu0 0.0
        %479 = vmatprep.subr.mxu0 0.0
        %480 = vmatpush1.xpose.msra.mxu0 0.0
        %481 = vmatprep.subr.mxu0 0.0
        %482 = vmatpush1.xpose.msra.mxu0 0.0
        %483 = vmatprep.subr.mxu0 0.0
        %484 = vmatpush1.xpose.msra.mxu0 0.0
        %485 = vmatprep.subr.mxu0 0.0
        %486 = vmatpush1.xpose.msra.mxu0 0.0
        %487 = vmatprep.subr.mxu0 0.0
        %488 = vmatpush1.xpose.msra.mxu0 0.0
        %489 = vmatprep.subr.mxu0 0.0
        %490 = vmatpush1.xpose.msra.mxu0 0.0
        %491 = vmatprep.subr.mxu0 0.0
        %492 = vmatpush1.xpose.msra.mxu0 0.0
        %493 = vmatprep.subr.mxu0 0.0
        %494 = vmatpush1.xpose.msra.mxu0 0.0
        %495 = vmatprep.subr.mxu0 0.0
        %496 = vmatpush1.xpose.msra.mxu0 0.0
        %497 = vmatprep.subr.mxu0 0.0
        %498 = vmatpush1.xpose.msra.mxu0 0.0
        %499 = vmatprep.subr.mxu0 0.0
        %500 = vmatpush1.xpose.msra.mxu0 0.0
        %501 = vmatprep.subr.mxu0 0.0
        %502 = vmatpush1.xpose.msra.mxu0 0.0
        %503 = vmatprep.subr.mxu0 0.0
        %504 = vmatpush1.xpose.msra.mxu0 0.0
        %505 = vmatprep.subr.mxu0 0.0
        %506 = vmatpush1.xpose.msra.mxu0 0.0
        %507 = vmatprep.subr.mxu0 0.0
        %508 = vmatpush1.xpose.msra.mxu0 0.0
        %509 = vmatprep.subr.mxu0 0.0
        %510 = vmatpush1.xpose.msra.mxu0 0.0
        %511 = vmatprep.subr.mxu0 0.0
        %512 = vmatpush1.xpose.msra.mxu0 0.0
        %513 = vmatprep.subr.mxu0 0.0
        %514 = vmatpush1.xpose.msra.mxu0 0.0
        %515 = vmatprep.subr.mxu0 0.0
        %516 = vmatpush1.xpose.msra.mxu0 0.0
        %517 = vmatprep.subr.mxu0 0.0
        %518 = vmatpush1.xpose.msra.mxu0 0.0
        %519 = vmatprep.subr.mxu0 0.0
        %520 = vmatpush1.xpose.msra.mxu0 0.0
        %521 = vmatprep.subr.mxu0 0.0
        %522 = vmatpush1.xpose.msra.mxu0 0.0
        %523 = vmatprep.mubr.f32.mxu0 0.0
        %524 = vmatmul.mubr.f32.gmra.mrb[0].mxu0 %v455
        %v525 = vpop.f32.mrb[0].mxu0
        %v526 = vadd.f32 0.0, %v525
        %v527 = vpop.f32.mrb[0].mxu0
        %528 = vdwg.mxu0
        %529 = vrot.lane.b32.xlu0 %v447, 96
        %v530 = vpop.permute.xlu0 %529
        %v531 = vsel %vm454, %v447, 0
        %v533 = vsel %vm454, %v530, 0
        %535 = vmatprep.subr.mxu0 0.0
        %536 = vmatpush1.xpose.msra.mxu0 %v533
        %537 = vmatprep.subr.mxu0 0.0
        %538 = vmatpush1.xpose.msra.mxu0 0.0
        %539 = vmatprep.subr.mxu0 0.0
        %540 = vmatpush1.xpose.msra.mxu0 0.0
        %541 = vmatprep.subr.mxu0 0.0
        %542 = vmatpush1.xpose.msra.mxu0 0.0
        %543 = vmatprep.subr.mxu0 0.0
        %544 = vmatpush1.xpose.msra.mxu0 0.0
        %545 = vmatprep.subr.mxu0 0.0
        %546 = vmatpush1.xpose.msra.mxu0 0.0
        %547 = vmatprep.subr.mxu0 0.0
        %548 = vmatpush1.xpose.msra.mxu0 0.0
        %549 = vmatprep.subr.mxu0 0.0
        %550 = vmatpush1.xpose.msra.mxu0 0.0
        %551 = vmatprep.subr.mxu0 0.0
        %552 = vmatpush1.xpose.msra.mxu0 0.0
        %553 = vmatprep.subr.mxu0 0.0
        %554 = vmatpush1.xpose.msra.mxu0 0.0
        %555 = vmatprep.subr.mxu0 0.0
        %556 = vmatpush1.xpose.msra.mxu0 0.0
        %557 = vmatprep.subr.mxu0 0.0
        %558 = vmatpush1.xpose.msra.mxu0 0.0
        %559 = vmatprep.subr.mxu0 0.0
        %560 = vmatpush1.xpose.msra.mxu0 0.0
        %561 = vmatprep.subr.mxu0 0.0
        %562 = vmatpush1.xpose.msra.mxu0 0.0
        %563 = vmatprep.subr.mxu0 0.0
        %564 = vmatpush1.xpose.msra.mxu0 0.0
        %565 = vmatprep.subr.mxu0 0.0
        %566 = vmatpush1.xpose.msra.mxu0 0.0
        %567 = vmatprep.subr.mxu0 0.0
        %568 = vmatpush1.xpose.msra.mxu0 0.0
        %569 = vmatprep.subr.mxu0 0.0
        %570 = vmatpush1.xpose.msra.mxu0 0.0
        %571 = vmatprep.subr.mxu0 0.0
        %572 = vmatpush1.xpose.msra.mxu0 0.0
        %573 = vmatprep.subr.mxu0 0.0
        %574 = vmatpush1.xpose.msra.mxu0 0.0
        %575 = vmatprep.subr.mxu0 0.0
        %576 = vmatpush1.xpose.msra.mxu0 0.0
        %577 = vmatprep.subr.mxu0 0.0
        %578 = vmatpush1.xpose.msra.mxu0 0.0
        %579 = vmatprep.subr.mxu0 0.0
        %580 = vmatpush1.xpose.msra.mxu0 0.0
        %581 = vmatprep.subr.mxu0 0.0
        %582 = vmatpush1.xpose.msra.mxu0 0.0
        %583 = vmatprep.subr.mxu0 0.0
        %584 = vmatpush1.xpose.msra.mxu0 0.0
        %585 = vmatprep.subr.mxu0 0.0
        %586 = vmatpush1.xpose.msra.mxu0 0.0
        %587 = vmatprep.subr.mxu0 0.0
        %588 = vmatpush1.xpose.msra.mxu0 0.0
        %589 = vmatprep.subr.mxu0 0.0
        %590 = vmatpush1.xpose.msra.mxu0 0.0
        %591 = vmatprep.subr.mxu0 0.0
        %592 = vmatpush1.xpose.msra.mxu0 0.0
        %593 = vmatprep.subr.mxu0 0.0
        %594 = vmatpush1.xpose.msra.mxu0 0.0
        %595 = vmatprep.subr.mxu0 0.0
        %596 = vmatpush1.xpose.msra.mxu0 0.0
        %597 = vmatprep.subr.mxu0 0.0
        %598 = vmatpush1.xpose.msra.mxu0 0.0
        %599 = vmatprep.mubr.f32.mxu0 0.0
        %600 = vmatmul.mubr.f32.gmra.mrb[0].mxu0 %v531
        %v601 = vpop.f32.mrb[0].mxu0
        %v602 = vadd.f32 0.0, %v601
        %v603 = vpop.f32.mrb[0].mxu0
        %604 = vdwg.mxu0
        %605 = vrot.lane.b32.xlu0 %v449, 96
        %v606 = vpop.permute.xlu0 %605
        %v607 = vsel %vm454, %v449, 0
        %v609 = vsel %vm454, %v606, 0
        %611 = vmatprep.subr.mxu0 0.0
        %612 = vmatpush1.xpose.msra.mxu0 %v609
        %613 = vmatprep.subr.mxu0 0.0
        %614 = vmatpush1.xpose.msra.mxu0 0.0
        %615 = vmatprep.subr.mxu0 0.0
        %616 = vmatpush1.xpose.msra.mxu0 0.0
        %617 = vmatprep.subr.mxu0 0.0
        %618 = vmatpush1.xpose.msra.mxu0 0.0
        %619 = vmatprep.subr.mxu0 0.0
        %620 = vmatpush1.xpose.msra.mxu0 0.0
        %621 = vmatprep.subr.mxu0 0.0
        %622 = vmatpush1.xpose.msra.mxu0 0.0
        %623 = vmatprep.subr.mxu0 0.0
        %624 = vmatpush1.xpose.msra.mxu0 0.0
        %625 = vmatprep.subr.mxu0 0.0
        %626 = vmatpush1.xpose.msra.mxu0 0.0
        %627 = vmatprep.subr.mxu0 0.0
        %628 = vmatpush1.xpose.msra.mxu0 0.0
        %629 = vmatprep.subr.mxu0 0.0
        %630 = vmatpush1.xpose.msra.mxu0 0.0
        %631 = vmatprep.subr.mxu0 0.0
        %632 = vmatpush1.xpose.msra.mxu0 0.0
        %633 = vmatprep.subr.mxu0 0.0
        %634 = vmatpush1.xpose.msra.mxu0 0.0
        %635 = vmatprep.subr.mxu0 0.0
        %636 = vmatpush1.xpose.msra.mxu0 0.0
        %637 = vmatprep.subr.mxu0 0.0
        %638 = vmatpush1.xpose.msra.mxu0 0.0
        %639 = vmatprep.subr.mxu0 0.0
        %640 = vmatpush1.xpose.msra.mxu0 0.0
        %641 = vmatprep.subr.mxu0 0.0
        %642 = vmatpush1.xpose.msra.mxu0 0.0
        %643 = vmatprep.subr.mxu0 0.0
        %644 = vmatpush1.xpose.msra.mxu0 0.0
        %645 = vmatprep.subr.mxu0 0.0
        %646 = vmatpush1.xpose.msra.mxu0 0.0
        %647 = vmatprep.subr.mxu0 0.0
        %648 = vmatpush1.xpose.msra.mxu0 0.0
        %649 = vmatprep.subr.mxu0 0.0
        %650 = vmatpush1.xpose.msra.mxu0 0.0
        %651 = vmatprep.subr.mxu0 0.0
        %652 = vmatpush1.xpose.msra.mxu0 0.0
        %653 = vmatprep.subr.mxu0 0.0
        %654 = vmatpush1.xpose.msra.mxu0 0.0
        %655 = vmatprep.subr.mxu0 0.0
        %656 = vmatpush1.xpose.msra.mxu0 0.0
        %657 = vmatprep.subr.mxu0 0.0
        %658 = vmatpush1.xpose.msra.mxu0 0.0
        %659 = vmatprep.subr.mxu0 0.0
        %660 = vmatpush1.xpose.msra.mxu0 0.0
        %661 = vmatprep.subr.mxu0 0.0
        %662 = vmatpush1.xpose.msra.mxu0 0.0
        %663 = vmatprep.subr.mxu0 0.0
        %664 = vmatpush1.xpose.msra.mxu0 0.0
        %665 = vmatprep.subr.mxu0 0.0
        %666 = vmatpush1.xpose.msra.mxu0 0.0
        %667 = vmatprep.subr.mxu0 0.0
        %668 = vmatpush1.xpose.msra.mxu0 0.0
        %669 = vmatprep.subr.mxu0 0.0
        %670 = vmatpush1.xpose.msra.mxu0 0.0
        %671 = vmatprep.subr.mxu0 0.0
        %672 = vmatpush1.xpose.msra.mxu0 0.0
        %673 = vmatprep.subr.mxu0 0.0
        %674 = vmatpush1.xpose.msra.mxu0 0.0
        %675 = vmatprep.mubr.f32.mxu0 0.0
        %676 = vmatmul.mubr.f32.gmra.mrb[0].mxu0 %v607
        %v677 = vpop.f32.mrb[0].mxu0
        %v678 = vadd.f32 0.0, %v677
        %v679 = vpop.f32.mrb[0].mxu0
        %680 = vdwg.mxu0
        %681 = vrot.lane.b32.xlu0 %v451, 96
        %v682 = vpop.permute.xlu0 %681
        %v683 = vsel %vm454, %v451, 0
        %v685 = vsel %vm454, %v682, 0
        %687 = vmatprep.subr.mxu0 0.0
        %688 = vmatpush1.xpose.msra.mxu0 %v685
        %689 = vmatprep.subr.mxu0 0.0
        %690 = vmatpush1.xpose.msra.mxu0 0.0
        %691 = vmatprep.subr.mxu0 0.0
        %692 = vmatpush1.xpose.msra.mxu0 0.0
        %693 = vmatprep.subr.mxu0 0.0
        %694 = vmatpush1.xpose.msra.mxu0 0.0
        %695 = vmatprep.subr.mxu0 0.0
        %696 = vmatpush1.xpose.msra.mxu0 0.0
        %697 = vmatprep.subr.mxu0 0.0
        %698 = vmatpush1.xpose.msra.mxu0 0.0
        %699 = vmatprep.subr.mxu0 0.0
        %700 = vmatpush1.xpose.msra.mxu0 0.0
        %701 = vmatprep.subr.mxu0 0.0
        %702 = vmatpush1.xpose.msra.mxu0 0.0
        %703 = vmatprep.subr.mxu0 0.0
        %704 = vmatpush1.xpose.msra.mxu0 0.0
        %705 = vmatprep.subr.mxu0 0.0
        %706 = vmatpush1.xpose.msra.mxu0 0.0
        %707 = vmatprep.subr.mxu0 0.0
        %708 = vmatpush1.xpose.msra.mxu0 0.0
        %709 = vmatprep.subr.mxu0 0.0
        %710 = vmatpush1.xpose.msra.mxu0 0.0
        %711 = vmatprep.subr.mxu0 0.0
        %712 = vmatpush1.xpose.msra.mxu0 0.0
        %713 = vmatprep.subr.mxu0 0.0
        %714 = vmatpush1.xpose.msra.mxu0 0.0
        %715 = vmatprep.subr.mxu0 0.0
        %716 = vmatpush1.xpose.msra.mxu0 0.0
        %717 = vmatprep.subr.mxu0 0.0
        %718 = vmatpush1.xpose.msra.mxu0 0.0
        %719 = vmatprep.subr.mxu0 0.0
        %720 = vmatpush1.xpose.msra.mxu0 0.0
        %721 = vmatprep.subr.mxu0 0.0
        %722 = vmatpush1.xpose.msra.mxu0 0.0
        %723 = vmatprep.subr.mxu0 0.0
        %724 = vmatpush1.xpose.msra.mxu0 0.0
        %725 = vmatprep.subr.mxu0 0.0
        %726 = vmatpush1.xpose.msra.mxu0 0.0
        %727 = vmatprep.subr.mxu0 0.0
        %728 = vmatpush1.xpose.msra.mxu0 0.0
        %729 = vmatprep.subr.mxu0 0.0
        %730 = vmatpush1.xpose.msra.mxu0 0.0
        %731 = vmatprep.subr.mxu0 0.0
        %732 = vmatpush1.xpose.msra.mxu0 0.0
        %733 = vmatprep.subr.mxu0 0.0
        %734 = vmatpush1.xpose.msra.mxu0 0.0
        %735 = vmatprep.subr.mxu0 0.0
        %736 = vmatpush1.xpose.msra.mxu0 0.0
        %737 = vmatprep.subr.mxu0 0.0
        %738 = vmatpush1.xpose.msra.mxu0 0.0
        %739 = vmatprep.subr.mxu0 0.0
        %740 = vmatpush1.xpose.msra.mxu0 0.0
        %741 = vmatprep.subr.mxu0 0.0
        %742 = vmatpush1.xpose.msra.mxu0 0.0
        %743 = vmatprep.subr.mxu0 0.0
        %744 = vmatpush1.xpose.msra.mxu0 0.0
        %745 = vmatprep.subr.mxu0 0.0
        %746 = vmatpush1.xpose.msra.mxu0 0.0
        %747 = vmatprep.subr.mxu0 0.0
        %748 = vmatpush1.xpose.msra.mxu0 0.0
        %749 = vmatprep.subr.mxu0 0.0
        %750 = vmatpush1.xpose.msra.mxu0 0.0
        %751 = vmatprep.mubr.f32.mxu0 0.0
        %752 = vmatmul.mubr.f32.gmra.mrb[0].mxu0 %v683
        %v753 = vpop.f32.mrb[0].mxu0
        %v754 = vadd.f32 0.0, %v753
        %v755 = vpop.f32.mrb[0].mxu0
        %756 = vdwg.mxu0
        %v757 = vmul.f32 %v526, 0.35355338
        %v758 = vmul.f32 %v602, 0.35355338
        %v759 = vmul.f32 %v678, 0.35355338
        %v760 = vmul.f32 %v754, 0.35355338
        %v762 = vlaneseq
        %v763 = vshrl.u32 %v762, 7
        %v764 = vsub.s32 0, %v763
        %v765 = vrot.slane %v336, %v764
        %v767 = vadd.f32 %v757, %v765
        %v768 = vadd.f32 %v758, %v765
        %v769 = vadd.f32 %v759, %v765
        %v770 = vadd.f32 %v760, %v765
        %v771 = vsel %vm454, %v767, -inf
        %772 = vmax.xlane.f32.xlu0 %v771
        %v773 = vpop.xlane.xlu0 %772
        %v774 = vsel %vm454, %v768, -inf
        %775 = vmax.xlane.f32.xlu0 %v774
        %v776 = vpop.xlane.xlu0 %775
        %v777 = vsel %vm454, %v769, -inf
        %778 = vmax.xlane.f32.xlu0 %v777
        %v779 = vpop.xlane.xlu0 %778
        %v780 = vsel %vm454, %v770, -inf
        %781 = vmax.xlane.f32.xlu0 %v780
        %v782 = vpop.xlane.xlu0 %781
        %v783 = vsub.f32 %v767, %v773
        %v784 = vsub.f32 %v768, %v776
        %v785 = vsub.f32 %v769, %v779
        %v786 = vsub.f32 %v770, %v782
        %v787 = vmul.f32 %v783, 1.442695
        %v788 = vpow.pop %v787
        %v789 = vmul.f32 %v784, 1.442695
        %v790 = vpow.pop %v789
        %v791 = vmul.f32 %v785, 1.442695
        %v792 = vpow.pop %v791
        %v793 = vmul.f32 %v786, 1.442695
        %v794 = vpow.pop %v793
        %v795 = vsel %vm454, %v788, 0.0
        %796 = vadd.xlane.f32.xlu0 %v795
        %v797 = vpop.xlane.xlu0 %796
        %v798 = vsel %vm454, %v790, 0.0
        %799 = vadd.xlane.f32.xlu0 %v798
        %v800 = vpop.xlane.xlu0 %799
        %v801 = vsel %vm454, %v792, 0.0
        %802 = vadd.xlane.f32.xlu0 %v801
        %v803 = vpop.xlane.xlu0 %802
        %v804 = vsel %vm454, %v794, 0.0
        %805 = vadd.xlane.f32.xlu0 %v804
        %v806 = vpop.xlane.xlu0 %805
        %v807 = vrcp.pop %v797
        %v808 = vrcp.pop %v800
        %v809 = vrcp.pop %v803
        %v810 = vrcp.pop %v806
        %v811 = vmul.f32 %v788, %v807
        %v812 = vmul.f32 %v790, %v808
        %v813 = vmul.f32 %v792, %v809
        %v814 = vmul.f32 %v794, %v810
        %815 = vrot.lane.b32.xlu0 %v442, 64
        %v816 = vpop.permute.xlu0 %815
        %v819 = vsel %vm454, %v811, 0
        %821 = vmatprep.subr.mxu0 0.0
        %822 = vmatpush1.msra.mxu0 %v816
        %823 = vmatprep.subr.mxu0 0.0
        %824 = vmatpush1.msra.mxu0 0.0
        %825 = vmatprep.subr.mxu0 0.0
        %826 = vmatpush1.msra.mxu0 0.0
        %827 = vmatprep.subr.mxu0 0.0
        %828 = vmatpush1.msra.mxu0 0.0
        %829 = vmatprep.subr.mxu0 0.0
        %830 = vmatpush1.msra.mxu0 0.0
        %831 = vmatprep.subr.mxu0 0.0
        %832 = vmatpush1.msra.mxu0 0.0
        %833 = vmatprep.subr.mxu0 0.0
        %834 = vmatpush1.msra.mxu0 0.0
        %835 = vmatprep.subr.mxu0 0.0
        %836 = vmatpush1.msra.mxu0 0.0
        %837 = vmatprep.subr.mxu0 0.0
        %838 = vmatpush1.msra.mxu0 0.0
        %839 = vmatprep.subr.mxu0 0.0
        %840 = vmatpush1.msra.mxu0 0.0
        %841 = vmatprep.subr.mxu0 0.0
        %842 = vmatpush1.msra.mxu0 0.0
        %843 = vmatprep.subr.mxu0 0.0
        %844 = vmatpush1.msra.mxu0 0.0
        %845 = vmatprep.subr.mxu0 0.0
        %846 = vmatpush1.msra.mxu0 0.0
        %847 = vmatprep.subr.mxu0 0.0
        %848 = vmatpush1.msra.mxu0 0.0
        %849 = vmatprep.subr.mxu0 0.0
        %850 = vmatpush1.msra.mxu0 0.0
        %851 = vmatprep.subr.mxu0 0.0
        %852 = vmatpush1.msra.mxu0 0.0
        %853 = vmatprep.subr.mxu0 0.0
        %854 = vmatpush1.msra.mxu0 0.0
        %855 = vmatprep.subr.mxu0 0.0
        %856 = vmatpush1.msra.mxu0 0.0
        %857 = vmatprep.subr.mxu0 0.0
        %858 = vmatpush1.msra.mxu0 0.0
        %859 = vmatprep.subr.mxu0 0.0
        %860 = vmatpush1.msra.mxu0 0.0
        %861 = vmatprep.subr.mxu0 0.0
        %862 = vmatpush1.msra.mxu0 0.0
        %863 = vmatprep.subr.mxu0 0.0
        %864 = vmatpush1.msra.mxu0 0.0
        %865 = vmatprep.subr.mxu0 0.0
        %866 = vmatpush1.msra.mxu0 0.0
        %867 = vmatprep.subr.mxu0 0.0
        %868 = vmatpush1.msra.mxu0 0.0
        %869 = vmatprep.subr.mxu0 0.0
        %870 = vmatpush1.msra.mxu0 0.0
        %871 = vmatprep.subr.mxu0 0.0
        %872 = vmatpush1.msra.mxu0 0.0
        %873 = vmatprep.subr.mxu0 0.0
        %874 = vmatpush1.msra.mxu0 0.0
        %875 = vmatprep.subr.mxu0 0.0
        %876 = vmatpush1.msra.mxu0 0.0
        %877 = vmatprep.subr.mxu0 0.0
        %878 = vmatpush1.msra.mxu0 0.0
        %879 = vmatprep.subr.mxu0 0.0
        %880 = vmatpush1.msra.mxu0 0.0
        %881 = vmatprep.subr.mxu0 0.0
        %882 = vmatpush1.msra.mxu0 0.0
        %883 = vmatprep.subr.mxu0 0.0
        %884 = vmatpush1.msra.mxu0 0.0
        %885 = vmatprep.mubr.f32.mxu0 0.0
        %886 = vmatmul.mubr.f32.gmra.mrb[0].mxu0 %v819
        %v887 = vpop.f32.mrb[0].mxu0
        %v888 = vadd.f32 0.0, %v887
        %v889 = vpop.f32.mrb[0].mxu0
        %890 = vdwg.mxu0
        %891 = vrot.lane.b32.xlu0 %v447, 64
        %v892 = vpop.permute.xlu0 %891
        %v895 = vsel %vm454, %v812, 0
        %897 = vmatprep.subr.mxu0 0.0
        %898 = vmatpush1.msra.mxu0 %v892
        %899 = vmatprep.subr.mxu0 0.0
        %900 = vmatpush1.msra.mxu0 0.0
        %901 = vmatprep.subr.mxu0 0.0
        %902 = vmatpush1.msra.mxu0 0.0
        %903 = vmatprep.subr.mxu0 0.0
        %904 = vmatpush1.msra.mxu0 0.0
        %905 = vmatprep.subr.mxu0 0.0
        %906 = vmatpush1.msra.mxu0 0.0
        %907 = vmatprep.subr.mxu0 0.0
        %908 = vmatpush1.msra.mxu0 0.0
        %909 = vmatprep.subr.mxu0 0.0
        %910 = vmatpush1.msra.mxu0 0.0
        %911 = vmatprep.subr.mxu0 0.0
        %912 = vmatpush1.msra.mxu0 0.0
        %913 = vmatprep.subr.mxu0 0.0
        %914 = vmatpush1.msra.mxu0 0.0
        %915 = vmatprep.subr.mxu0 0.0
        %916 = vmatpush1.msra.mxu0 0.0
        %917 = vmatprep.subr.mxu0 0.0
        %918 = vmatpush1.msra.mxu0 0.0
        %919 = vmatprep.subr.mxu0 0.0
        %920 = vmatpush1.msra.mxu0 0.0
        %921 = vmatprep.subr.mxu0 0.0
        %922 = vmatpush1.msra.mxu0 0.0
        %923 = vmatprep.subr.mxu0 0.0
        %924 = vmatpush1.msra.mxu0 0.0
        %925 = vmatprep.subr.mxu0 0.0
        %926 = vmatpush1.msra.mxu0 0.0
        %927 = vmatprep.subr.mxu0 0.0
        %928 = vmatpush1.msra.mxu0 0.0
        %929 = vmatprep.subr.mxu0 0.0
        %930 = vmatpush1.msra.mxu0 0.0
        %931 = vmatprep.subr.mxu0 0.0
        %932 = vmatpush1.msra.mxu0 0.0
        %933 = vmatprep.subr.mxu0 0.0
        %934 = vmatpush1.msra.mxu0 0.0
        %935 = vmatprep.subr.mxu0 0.0
        %936 = vmatpush1.msra.mxu0 0.0
        %937 = vmatprep.subr.mxu0 0.0
        %938 = vmatpush1.msra.mxu0 0.0
        %939 = vmatprep.subr.mxu0 0.0
        %940 = vmatpush1.msra.mxu0 0.0
        %941 = vmatprep.subr.mxu0 0.0
        %942 = vmatpush1.msra.mxu0 0.0
        %943 = vmatprep.subr.mxu0 0.0
        %944 = vmatpush1.msra.mxu0 0.0
        %945 = vmatprep.subr.mxu0 0.0
        %946 = vmatpush1.msra.mxu0 0.0
        %947 = vmatprep.subr.mxu0 0.0
        %948 = vmatpush1.msra.mxu0 0.0
        %949 = vmatprep.subr.mxu0 0.0
        %950 = vmatpush1.msra.mxu0 0.0
        %951 = vmatprep.subr.mxu0 0.0
        %952 = vmatpush1.msra.mxu0 0.0
        %953 = vmatprep.subr.mxu0 0.0
        %954 = vmatpush1.msra.mxu0 0.0
        %955 = vmatprep.subr.mxu0 0.0
        %956 = vmatpush1.msra.mxu0 0.0
        %957 = vmatprep.subr.mxu0 0.0
        %958 = vmatpush1.msra.mxu0 0.0
        %959 = vmatprep.subr.mxu0 0.0
        %960 = vmatpush1.msra.mxu0 0.0
        %961 = vmatprep.mubr.f32.mxu0 0.0
        %962 = vmatmul.mubr.f32.gmra.mrb[0].mxu0 %v895
        %v963 = vpop.f32.mrb[0].mxu0
        %v964 = vadd.f32 0.0, %v963
        %v965 = vpop.f32.mrb[0].mxu0
        %966 = vdwg.mxu0
        %967 = vrot.lane.b32.xlu0 %v449, 64
        %v968 = vpop.permute.xlu0 %967
        %v971 = vsel %vm454, %v813, 0
        %973 = vmatprep.subr.mxu0 0.0
        %974 = vmatpush1.msra.mxu0 %v968
        %975 = vmatprep.subr.mxu0 0.0
        %976 = vmatpush1.msra.mxu0 0.0
        %977 = vmatprep.subr.mxu0 0.0
        %978 = vmatpush1.msra.mxu0 0.0
        %979 = vmatprep.subr.mxu0 0.0
        %980 = vmatpush1.msra.mxu0 0.0
        %981 = vmatprep.subr.mxu0 0.0
        %982 = vmatpush1.msra.mxu0 0.0
        %983 = vmatprep.subr.mxu0 0.0
        %984 = vmatpush1.msra.mxu0 0.0
        %985 = vmatprep.subr.mxu0 0.0
        %986 = vmatpush1.msra.mxu0 0.0
        %987 = vmatprep.subr.mxu0 0.0
        %988 = vmatpush1.msra.mxu0 0.0
        %989 = vmatprep.subr.mxu0 0.0
        %990 = vmatpush1.msra.mxu0 0.0
        %991 = vmatprep.subr.mxu0 0.0
        %992 = vmatpush1.msra.mxu0 0.0
        %993 = vmatprep.subr.mxu0 0.0
        %994 = vmatpush1.msra.mxu0 0.0
        %995 = vmatprep.subr.mxu0 0.0
        %996 = vmatpush1.msra.mxu0 0.0
        %997 = vmatprep.subr.mxu0 0.0
        %998 = vmatpush1.msra.mxu0 0.0
        %999 = vmatprep.subr.mxu0 0.0
        %1000 = vmatpush1.msra.mxu0 0.0
        %1001 = vmatprep.subr.mxu0 0.0
        %1002 = vmatpush1.msra.mxu0 0.0
        %1003 = vmatprep.subr.mxu0 0.0
        %1004 = vmatpush1.msra.mxu0 0.0
        %1005 = vmatprep.subr.mxu0 0.0
        %1006 = vmatpush1.msra.mxu0 0.0
        %1007 = vmatprep.subr.mxu0 0.0
        %1008 = vmatpush1.msra.mxu0 0.0
        %1009 = vmatprep.subr.mxu0 0.0
        %1010 = vmatpush1.msra.mxu0 0.0
        %1011 = vmatprep.subr.mxu0 0.0
        %1012 = vmatpush1.msra.mxu0 0.0
        %1013 = vmatprep.subr.mxu0 0.0
        %1014 = vmatpush1.msra.mxu0 0.0
        %1015 = vmatprep.subr.mxu0 0.0
        %1016 = vmatpush1.msra.mxu0 0.0
        %1017 = vmatprep.subr.mxu0 0.0
        %1018 = vmatpush1.msra.mxu0 0.0
        %1019 = vmatprep.subr.mxu0 0.0
        %1020 = vmatpush1.msra.mxu0 0.0
        %1021 = vmatprep.subr.mxu0 0.0
        %1022 = vmatpush1.msra.mxu0 0.0
        %1023 = vmatprep.subr.mxu0 0.0
        %1024 = vmatpush1.msra.mxu0 0.0
        %1025 = vmatprep.subr.mxu0 0.0
        %1026 = vmatpush1.msra.mxu0 0.0
        %1027 = vmatprep.subr.mxu0 0.0
        %1028 = vmatpush1.msra.mxu0 0.0
        %1029 = vmatprep.subr.mxu0 0.0
        %1030 = vmatpush1.msra.mxu0 0.0
        %1031 = vmatprep.subr.mxu0 0.0
        %1032 = vmatpush1.msra.mxu0 0.0
        %1033 = vmatprep.subr.mxu0 0.0
        %1034 = vmatpush1.msra.mxu0 0.0
        %1035 = vmatprep.subr.mxu0 0.0
        %1036 = vmatpush1.msra.mxu0 0.0
        %1037 = vmatprep.mubr.f32.mxu0 0.0
        %1038 = vmatmul.mubr.f32.gmra.mrb[0].mxu0 %v971
        %v1039 = vpop.f32.mrb[0].mxu0
        %v1040 = vadd.f32 0.0, %v1039
        %v1041 = vpop.f32.mrb[0].mxu0
        %1042 = vdwg.mxu0
        %1043 = vrot.lane.b32.xlu0 %v451, 64
        %v1044 = vpop.permute.xlu0 %1043
        %v1047 = vsel %vm454, %v814, 0
        %1049 = vmatprep.subr.mxu0 0.0
        %1050 = vmatpush1.msra.mxu0 %v1044
        %1051 = vmatprep.subr.mxu0 0.0
        %1052 = vmatpush1.msra.mxu0 0.0
        %1053 = vmatprep.subr.mxu0 0.0
        %1054 = vmatpush1.msra.mxu0 0.0
        %1055 = vmatprep.subr.mxu0 0.0
        %1056 = vmatpush1.msra.mxu0 0.0
        %1057 = vmatprep.subr.mxu0 0.0
        %1058 = vmatpush1.msra.mxu0 0.0
        %1059 = vmatprep.subr.mxu0 0.0
        %1060 = vmatpush1.msra.mxu0 0.0
        %1061 = vmatprep.subr.mxu0 0.0
        %1062 = vmatpush1.msra.mxu0 0.0
        %1063 = vmatprep.subr.mxu0 0.0
        %1064 = vmatpush1.msra.mxu0 0.0
        %1065 = vmatprep.subr.mxu0 0.0
        %1066 = vmatpush1.msra.mxu0 0.0
        %1067 = vmatprep.subr.mxu0 0.0
        %1068 = vmatpush1.msra.mxu0 0.0
        %1069 = vmatprep.subr.mxu0 0.0
        %1070 = vmatpush1.msra.mxu0 0.0
        %1071 = vmatprep.subr.mxu0 0.0
        %1072 = vmatpush1.msra.mxu0 0.0
        %1073 = vmatprep.subr.mxu0 0.0
        %1074 = vmatpush1.msra.mxu0 0.0
        %1075 = vmatprep.subr.mxu0 0.0
        %1076 = vmatpush1.msra.mxu0 0.0
        %1077 = vmatprep.subr.mxu0 0.0
        %1078 = vmatpush1.msra.mxu0 0.0
        %1079 = vmatprep.subr.mxu0 0.0
        %1080 = vmatpush1.msra.mxu0 0.0
        %1081 = vmatprep.subr.mxu0 0.0
        %1082 = vmatpush1.msra.mxu0 0.0
        %1083 = vmatprep.subr.mxu0 0.0
        %1084 = vmatpush1.msra.mxu0 0.0
        %1085 = vmatprep.subr.mxu0 0.0
        %1086 = vmatpush1.msra.mxu0 0.0
        %1087 = vmatprep.subr.mxu0 0.0
        %1088 = vmatpush1.msra.mxu0 0.0
        %1089 = vmatprep.subr.mxu0 0.0
        %1090 = vmatpush1.msra.mxu0 0.0
        %1091 = vmatprep.subr.mxu0 0.0
        %1092 = vmatpush1.msra.mxu0 0.0
        %1093 = vmatprep.subr.mxu0 0.0
        %1094 = vmatpush1.msra.mxu0 0.0
        %1095 = vmatprep.subr.mxu0 0.0
        %1096 = vmatpush1.msra.mxu0 0.0
        %1097 = vmatprep.subr.mxu0 0.0
        %1098 = vmatpush1.msra.mxu0 0.0
        %1099 = vmatprep.subr.mxu0 0.0
        %1100 = vmatpush1.msra.mxu0 0.0
        %1101 = vmatprep.subr.mxu0 0.0
        %1102 = vmatpush1.msra.mxu0 0.0
        %1103 = vmatprep.subr.mxu0 0.0
        %1104 = vmatpush1.msra.mxu0 0.0
        %1105 = vmatprep.subr.mxu0 0.0
        %1106 = vmatpush1.msra.mxu0 0.0
        %1107 = vmatprep.subr.mxu0 0.0
        %1108 = vmatpush1.msra.mxu0 0.0
        %1109 = vmatprep.subr.mxu0 0.0
        %1110 = vmatpush1.msra.mxu0 0.0
        %1111 = vmatprep.subr.mxu0 0.0
        %1112 = vmatpush1.msra.mxu0 0.0
        %1113 = vmatprep.mubr.f32.mxu0 0.0
        %1114 = vmatmul.mubr.f32.gmra.mrb[0].mxu0 %v1047
        %v1115 = vpop.f32.mrb[0].mxu0
        %v1116 = vadd.f32 0.0, %v1115
        %v1117 = vpop.f32.mrb[0].mxu0
        %1118 = vdwg.mxu0
        %1120 = vrot.lane.b32.xlu0 %v964, 8
        %v1121 = vpop.permute.xlu0 %1120
        %1124 = vrot.lane.b32.xlu0 %v1040, 16
        %v1125 = vpop.permute.xlu0 %1124
        %1128 = vrot.lane.b32.xlu0 %v1116, 24
        %v1129 = vpop.permute.xlu0 %1128
        %v1131 = vsel %vm454, %v888, %v1121
        %vm1132 = vcmask 130048
        %v1133 = vsel %vm1132, %v1131, %v1125
        %vm1134 = vcmask 195584
        %v1135 = vsel %vm1134, %v1133, %v1129
        %v1136 = vld [vmem:[%s5] sm:$0xff]
        %v1137 = vld [vmem:[%s5 + $0x8] sm:$0xff]
        %v1138 = vld [vmem:[%s5 + $0x10] sm:$0xff]
        %v1139 = vld [vmem:[%s5 + $0x18] sm:$0xff]
        %v1140 = vlaneseq
        %v1141 = vshrl.u32 %v1140, 7
        %v1142 = vsub.s32 1, %v1141
        %v1143 = vrot.slane %v338, %v1142
        %v1145 = vsel %vm339, %v1135, 0
        %1147 = vmatprep.subr.mxu0 0.0
        %1148 = vmatpush1.msra.mxu0 %v1136
        %1149 = vmatprep.subr.mxu0 0.0
        %1150 = vmatpush1.msra.mxu0 %v1137
        %1151 = vmatprep.subr.mxu0 0.0
        %1152 = vmatpush1.msra.mxu0 %v1138
        %1153 = vmatprep.subr.mxu0 0.0
        %1154 = vmatpush1.msra.mxu0 %v1139
        %1155 = vmatprep.subr.mxu0 0.0
        %1156 = vmatpush1.msra.mxu0 0.0
        %1157 = vmatprep.subr.mxu0 0.0
        %1158 = vmatpush1.msra.mxu0 0.0
        %1159 = vmatprep.subr.mxu0 0.0
        %1160 = vmatpush1.msra.mxu0 0.0
        %1161 = vmatprep.subr.mxu0 0.0
        %1162 = vmatpush1.msra.mxu0 0.0
        %1163 = vmatprep.subr.mxu0 0.0
        %1164 = vmatpush1.msra.mxu0 0.0
        %1165 = vmatprep.subr.mxu0 0.0
        %1166 = vmatpush1.msra.mxu0 0.0
        %1167 = vmatprep.subr.mxu0 0.0
        %1168 = vmatpush1.msra.mxu0 0.0
        %1169 = vmatprep.subr.mxu0 0.0
        %1170 = vmatpush1.msra.mxu0 0.0
        %1171 = vmatprep.subr.mxu0 0.0
        %1172 = vmatpush1.msra.mxu0 0.0
        %1173 = vmatprep.subr.mxu0 0.0
        %1174 = vmatpush1.msra.mxu0 0.0
        %1175 = vmatprep.subr.mxu0 0.0
        %1176 = vmatpush1.msra.mxu0 0.0
        %1177 = vmatprep.subr.mxu0 0.0
        %1178 = vmatpush1.msra.mxu0 0.0
        %1179 = vmatprep.subr.mxu0 0.0
        %1180 = vmatpush1.msra.mxu0 0.0
        %1181 = vmatprep.subr.mxu0 0.0
        %1182 = vmatpush1.msra.mxu0 0.0
        %1183 = vmatprep.subr.mxu0 0.0
        %1184 = vmatpush1.msra.mxu0 0.0
        %1185 = vmatprep.subr.mxu0 0.0
        %1186 = vmatpush1.msra.mxu0 0.0
        %1187 = vmatprep.subr.mxu0 0.0
        %1188 = vmatpush1.msra.mxu0 0.0
        %1189 = vmatprep.subr.mxu0 0.0
        %1190 = vmatpush1.msra.mxu0 0.0
        %1191 = vmatprep.subr.mxu0 0.0
        %1192 = vmatpush1.msra.mxu0 0.0
        %1193 = vmatprep.subr.mxu0 0.0
        %1194 = vmatpush1.msra.mxu0 0.0
        %1195 = vmatprep.subr.mxu0 0.0
        %1196 = vmatpush1.msra.mxu0 0.0
        %1197 = vmatprep.subr.mxu0 0.0
        %1198 = vmatpush1.msra.mxu0 0.0
        %1199 = vmatprep.subr.mxu0 0.0
        %1200 = vmatpush1.msra.mxu0 0.0
        %1201 = vmatprep.subr.mxu0 0.0
        %1202 = vmatpush1.msra.mxu0 0.0
        %1203 = vmatprep.subr.mxu0 0.0
        %1204 = vmatpush1.msra.mxu0 0.0
        %1205 = vmatprep.subr.mxu0 0.0
        %1206 = vmatpush1.msra.mxu0 0.0
        %1207 = vmatprep.subr.mxu0 0.0
        %1208 = vmatpush1.msra.mxu0 0.0
        %1209 = vmatprep.subr.mxu0 0.0
        %1210 = vmatpush1.msra.mxu0 0.0
        %1211 = vmatprep.mubr.f32.mxu0 0.0
        %1212 = vmatmul.mubr.f32.gmra.mrb[0].mxu0 %v1145
        %v1213 = vpop.f32.mrb[0].mxu0
        %v1214 = vadd.f32 %v1143, %v1213
        %v1215 = vpop.f32.mrb[0].mxu0
        %1216 = vdwg.mxu0
        %v1217 = vadd.f32 %v335, %v1214
        %v1218 = vsel %vm339, %v1217, 0.0
        %1219 = vadd.xlane.f32.xlu0 %v1218
        %v1220 = vpop.xlane.xlu0 %1219
        %v1221 = vmul.f32 %v1220, %v343
        %v1222 = vsub.f32 %v1217, %v1221
        %v1223 = vmul.f32 %v1222, %v1222
        %v1224 = vsel %vm339, %v1223, 0.0
        %1225 = vadd.xlane.f32.xlu0 %v1224
        %v1226 = vpop.xlane.xlu0 %1225
        %v1227 = vmul.f32 %v1226, %v343
        %v1228 = vadd.f32 %v1227, 1e-05
        %v1229 = vrsqrt.pop %v1228
        %v1230 = vmul.f32 %v1222, %v1229
        %v1231 = vlaneseq
        %v1232 = vshrl.u32 %v1231, 7
        %v1233 = vsub.s32 2, %v1232
        %v1234 = vrot.slane %v337, %v1233
        %v1235 = vmul.f32 %v1230, %v1234
        %v1236 = vlaneseq
        %v1237 = vshrl.u32 %v1236, 7
        %v1238 = vsub.s32 3, %v1237
        %v1239 = vrot.slane %v337, %v1238
        %v1240 = vadd.f32 %v1235, %v1239
        %v1241 = vld [vmem:[%s6] sm:$0xff]
        %v1242 = vld [vmem:[%s6 + $0x8] sm:$0xff]
        %v1243 = vld [vmem:[%s6 + $0x10] sm:$0xff]
        %v1244 = vld [vmem:[%s6 + $0x18] sm:$0xff]
        %v1245 = vlaneseq
        %v1246 = vshrl.u32 %v1245, 7
        %v1247 = vsub.s32 2, %v1246
        %v1248 = vrot.slane %v338, %v1247
        %v1250 = vsel %vm339, %v1240, 0
        %1252 = vmatprep.subr.mxu0 0.0
        %1253 = vmatpush1.msra.mxu0 %v1241
        %1254 = vmatprep.subr.mxu0 0.0
        %1255 = vmatpush1.msra.mxu0 %v1242
        %1256 = vmatprep.subr.mxu0 0.0
        %1257 = vmatpush1.msra.mxu0 %v1243
        %1258 = vmatprep.subr.mxu0 0.0
        %1259 = vmatpush1.msra.mxu0 %v1244
        %1260 = vmatprep.subr.mxu0 0.0
        %1261 = vmatpush1.msra.mxu0 0.0
        %1262 = vmatprep.subr.mxu0 0.0
        %1263 = vmatpush1.msra.mxu0 0.0
        %1264 = vmatprep.subr.mxu0 0.0
        %1265 = vmatpush1.msra.mxu0 0.0
        %1266 = vmatprep.subr.mxu0 0.0
        %1267 = vmatpush1.msra.mxu0 0.0
        %1268 = vmatprep.subr.mxu0 0.0
        %1269 = vmatpush1.msra.mxu0 0.0
        %1270 = vmatprep.subr.mxu0 0.0
        %1271 = vmatpush1.msra.mxu0 0.0
        %1272 = vmatprep.subr.mxu0 0.0
        %1273 = vmatpush1.msra.mxu0 0.0
        %1274 = vmatprep.subr.mxu0 0.0
        %1275 = vmatpush1.msra.mxu0 0.0
        %1276 = vmatprep.subr.mxu0 0.0
        %1277 = vmatpush1.msra.mxu0 0.0
        %1278 = vmatprep.subr.mxu0 0.0
        %1279 = vmatpush1.msra.mxu0 0.0
        %1280 = vmatprep.subr.mxu0 0.0
        %1281 = vmatpush1.msra.mxu0 0.0
        %1282 = vmatprep.subr.mxu0 0.0
        %1283 = vmatpush1.msra.mxu0 0.0
        %1284 = vmatprep.subr.mxu0 0.0
        %1285 = vmatpush1.msra.mxu0 0.0
        %1286 = vmatprep.subr.mxu0 0.0
        %1287 = vmatpush1.msra.mxu0 0.0
        %1288 = vmatprep.subr.mxu0 0.0
        %1289 = vmatpush1.msra.mxu0 0.0
        %1290 = vmatprep.subr.mxu0 0.0
        %1291 = vmatpush1.msra.mxu0 0.0
        %1292 = vmatprep.subr.mxu0 0.0
        %1293 = vmatpush1.msra.mxu0 0.0
        %1294 = vmatprep.subr.mxu0 0.0
        %1295 = vmatpush1.msra.mxu0 0.0
        %1296 = vmatprep.subr.mxu0 0.0
        %1297 = vmatpush1.msra.mxu0 0.0
        %1298 = vmatprep.subr.mxu0 0.0
        %1299 = vmatpush1.msra.mxu0 0.0
        %1300 = vmatprep.subr.mxu0 0.0
        %1301 = vmatpush1.msra.mxu0 0.0
        %1302 = vmatprep.subr.mxu0 0.0
        %1303 = vmatpush1.msra.mxu0 0.0
        %1304 = vmatprep.subr.mxu0 0.0
        %1305 = vmatpush1.msra.mxu0 0.0
        %1306 = vmatprep.subr.mxu0 0.0
        %1307 = vmatpush1.msra.mxu0 0.0
        %1308 = vmatprep.subr.mxu0 0.0
        %1309 = vmatpush1.msra.mxu0 0.0
        %1310 = vmatprep.subr.mxu0 0.0
        %1311 = vmatpush1.msra.mxu0 0.0
        %1312 = vmatprep.subr.mxu0 0.0
        %1313 = vmatpush1.msra.mxu0 0.0
        %1314 = vmatprep.subr.mxu0 0.0
        %1315 = vmatpush1.msra.mxu0 0.0
        %1316 = vmatprep.mubr.f32.mxu0 0.0
        %1317 = vmatmul.mubr.f32.gmra.mrb[0].mxu0 %v1250
        %v1318 = vpop.f32.mrb[0].mxu0
        %v1319 = vadd.f32 %v1248, %v1318
        %v1320 = vpop.f32.mrb[0].mxu0
        %1321 = vdwg.mxu0
        %v1322 = vmax.f32 %v1319, 0.0
        %v1323 = vld [vmem:[%s7] sm:$0xff]
        %v1324 = vld [vmem:[%s7 + $0x8] sm:$0xff]
        %v1325 = vld [vmem:[%s7 + $0x10] sm:$0xff]
        %v1326 = vld [vmem:[%s7 + $0x18] sm:$0xff]
        %v1327 = vld [vmem:[%s7 + $0x20] sm:$0xff]
        %v1328 = vld [vmem:[%s7 + $0x28] sm:$0xff]
        %v1329 = vld [vmem:[%s7 + $0x30] sm:$0xff]
        %v1330 = vld [vmem:[%s7 + $0x38] sm:$0xff]
        %v1331 = vlaneseq
        %v1332 = vshrl.u32 %v1331, 7
        %v1333 = vsub.s32 3, %v1332
        %v1334 = vrot.slane %v338, %v1333
        %vm1335 = vcmask 523264
        %v1337 = vsel %vm1335, %v1322, 0
        %1339 = vmatprep.subr.mxu0 0.0
        %1340 = vmatpush1.msra.mxu0 %v1323
        %1341 = vmatprep.subr.mxu0 0.0
        %1342 = vmatpush1.msra.mxu0 %v1324
        %1343 = vmatprep.subr.mxu0 0.0
        %1344 = vmatpush1.msra.mxu0 %v1325
        %1345 = vmatprep.subr.mxu0 0.0
        %1346 = vmatpush1.msra.mxu0 %v1326
        %1347 = vmatprep.subr.mxu0 0.0
        %1348 = vmatpush1.msra.mxu0 %v1327
        %1349 = vmatprep.subr.mxu0 0.0
        %1350 = vmatpush1.msra.mxu0 %v1328
        %1351 = vmatprep.subr.mxu0 0.0
        %1352 = vmatpush1.msra.mxu0 %v1329
        %1353 = vmatprep.subr.mxu0 0.0
        %1354 = vmatpush1.msra.mxu0 %v1330
        %1355 = vmatprep.subr.mxu0 0.0
        %1356 = vmatpush1.msra.mxu0 0.0
        %1357 = vmatprep.subr.mxu0 0.0
        %1358 = vmatpush1.msra.mxu0 0.0
        %1359 = vmatprep.subr.mxu0 0.0
        %1360 = vmatpush1.msra.mxu0 0.0
        %1361 = vmatprep.subr.mxu0 0.0
        %1362 = vmatpush1.msra.mxu0 0.0
        %1363 = vmatprep.subr.mxu0 0.0
        %1364 = vmatpush1.msra.mxu0 0.0
        %1365 = vmatprep.subr.mxu0 0.0
        %1366 = vmatpush1.msra.mxu0 0.0
        %1367 = vmatprep.subr.mxu0 0.0
        %1368 = vmatpush1.msra.mxu0 0.0
        %1369 = vmatprep.subr.mxu0 0.0
        %1370 = vmatpush1.msra.mxu0 0.0
        %1371 = vmatprep.subr.mxu0 0.0
        %1372 = vmatpush1.msra.mxu0 0.0
        %1373 = vmatprep.subr.mxu0 0.0
        %1374 = vmatpush1.msra.mxu0 0.0
        %1375 = vmatprep.subr.mxu0 0.0
        %1376 = vmatpush1.msra.mxu0 0.0
        %1377 = vmatprep.subr.mxu0 0.0
        %1378 = vmatpush1.msra.mxu0 0.0
        %1379 = vmatprep.subr.mxu0 0.0
        %1380 = vmatpush1.msra.mxu0 0.0
        %1381 = vmatprep.subr.mxu0 0.0
        %1382 = vmatpush1.msra.mxu0 0.0
        %1383 = vmatprep.subr.mxu0 0.0
        %1384 = vmatpush1.msra.mxu0 0.0
        %1385 = vmatprep.subr.mxu0 0.0
        %1386 = vmatpush1.msra.mxu0 0.0
        %1387 = vmatprep.subr.mxu0 0.0
        %1388 = vmatpush1.msra.mxu0 0.0
        %1389 = vmatprep.subr.mxu0 0.0
        %1390 = vmatpush1.msra.mxu0 0.0
        %1391 = vmatprep.subr.mxu0 0.0
        %1392 = vmatpush1.msra.mxu0 0.0
        %1393 = vmatprep.subr.mxu0 0.0
        %1394 = vmatpush1.msra.mxu0 0.0
        %1395 = vmatprep.subr.mxu0 0.0
        %1396 = vmatpush1.msra.mxu0 0.0
        %1397 = vmatprep.subr.mxu0 0.0
        %1398 = vmatpush1.msra.mxu0 0.0
        %1399 = vmatprep.subr.mxu0 0.0
        %1400 = vmatpush1.msra.mxu0 0.0
        %1401 = vmatprep.subr.mxu0 0.0
        %1402 = vmatpush1.msra.mxu0 0.0
        %1403 = vmatprep.mubr.f32.mxu0 0.0
        %1404 = vmatmul.mubr.f32.gmra.mrb[0].mxu0 %v1337
        %v1405 = vpop.f32.mrb[0].mxu0
        %v1406 = vadd.f32 %v1334, %v1405
        %v1407 = vpop.f32.mrb[0].mxu0
        %1408 = vdwg.mxu0
        %v1409 = vadd.f32 %v1217, %v1406
        %1410 = vst.msk [vmem:[%s331] sm:$0xff] %vm339, %v1409
        %s1411 = sand.u32 %s211, 1
        %s1412 = scalar_lea.sflag [#allocation4], %s1411
        %s1413 = sand.u32 %s211, 1
        %s1414 = smul.addr %s1413, 8
        %s1415 = scalar_lea.vmem [#allocation5], %s1414
        // Predicated region
        $region57: #{tpu_custom_call.1} parent=51 // pred_check
          %p1416 = pneg %p221
        $region58: #{tpu_custom_call.1} parent=51 // pred_check_branch
          %1418 = sbr.rel (%p1416) target = $region60
        $region59: #{tpu_custom_call.1} parent=51 // pred_region
          %s1420 = ssub.s32 128, 128
          %1421 = vsyncadd %s1412, %s1420
          %s1422 = smul.addr %s25, 128
          %s1423 = scalar_lea.hbm %s8, %s1422
          %s1425 = sshll.u32 %s1415, 4
          %s1426 = int_to_ptr.vmem [resolvable:$true] %s1425
          %1428 = dma.vmem_to_hbm [thread:$0]  %s1426, 128, %s1423, %s1412
        $region60: #{tpu_custom_call.1} parent=51 // pred_fallthru
          _
      $region52: #{tpu_custom_call.1} parent=5 // pred_fallthru
        _
      %p1429 = scmp.le.s32.totalorder 2, %s20
      // Predicated region
      $region61: #{tpu_custom_call.1} parent=5 // pred_check
        %p1430 = pneg %p1429
      $region62: #{tpu_custom_call.1} parent=5 // pred_check_branch
        %1432 = sbr.rel (%p1430) target = $region64
      $region63: #{tpu_custom_call.1} parent=5 // pred_region
        %s1433 = ssub.s32 %s20, 2
        // Predicated region
        $region65: #{tpu_custom_call.1} parent=63 // pred_check
          %p1434 = pneg %p227
        $region66: #{tpu_custom_call.1} parent=63 // pred_check_branch
          %1436 = sbr.rel (%p1434) target = $region68
        $region67: #{tpu_custom_call.1} parent=63 // pred_region
          %s1437 = sand.u32 %s212, 1
          %s1438 = scalar_lea.sflag [#allocation4], %s1437
          %s1439 = sand.u32 %s212, 1
          %s1440 = smul.addr %s1439, 8
          %s1441 = scalar_lea.vmem [#allocation5], %s1440
          %1442 = dma.done %s1438, 128
        $region68: #{tpu_custom_call.1} parent=63 // pred_fallthru
          _
      $region64: #{tpu_custom_call.1} parent=5 // pred_fallthru
        _
    $region6: #{tpu_custom_call.1} parent=1 // loop_footer
      %s24 = sadd.s32 1, %s20
    $region7: #{tpu_custom_call.1} parent=1 // loop_footer_branch
      %19 = sbr.rel target = $region3
    $region8: #{tpu_custom_call.1} parent=1 // loop_exit
      _
    %1443 = vsyncpa [#allocation3], 1
    %s1444 = scalar_lea.sflag [#allocation3], 1
    %1445 = vsyncpa %s1444, 1
    %1446 = vsyncpa [#allocation4], 1
    %s1447 = scalar_lea.sflag [#allocation4], 1
    %1448 = vsyncpa %s1447, 1

</llo_original>
